<compile_context>
chip_gen: v5e
topology: v5e:2x2
jax: 0.10.0
libtpu: 0.0.40
codegen_flags: <defaults>
</compile_context>

<pallas_src>
import functools

import jax
import jax.numpy as jnp
import numpy as np
from jax.experimental import pallas as pl
from jax.experimental.pallas import tpu as pltpu


# ---------------------------------------------------------------------------
# Kernel: one grid step = TB batch elements, whole network fused.
# ---------------------------------------------------------------------------
def cnn_gap_kernel(x_ref, w1_ref, b1_ref, w2_ref, b2_ref, w3_ref, b3_ref,
                   pool_ref, wd_ref, bd_ref, o_ref, *, seg_len):
    M = x_ref.shape[0]                    # TB * seg_len rows
    x = x_ref[...]                        # (M, 50) patches of the 1-D signal

    # Per-segment row index, computed ONCE and reused by every mask below
    # (JAX does not CSE broadcast_in_dim, so don't regenerate per helper).
    seg = jax.lax.broadcasted_iota(jnp.int32, (M, 1), 0) % seg_len

    # ---- conv1 (k=50, s=50, C_in=1) == patch matmul, + ReLU ---------------
    h = jnp.dot(x, w1_ref[...], preferred_element_type=jnp.float32) + b1_ref[...]
    h = jnp.maximum(h, 0.0)               # (M, 64); all rows valid

    # ---- pool1: MaxPool1d(2); valid rows -> seg % 2 == 0 ------------------
    nxt = pltpu.roll(h, shift=M - 1, axis=0)         # nxt[r] = h[r + 1]
    h = jnp.maximum(h, nxt)               # boundary rows (seg odd) are unused

    # ---- conv2 (k=2, padding='same') + ReLU, both taps fused --------------
    # valid inputs spaced 2 rows apart; right zero pad at the last valid row
    # of each segment (PyTorch 'same' with even kernel pads on the right).
    nxt = pltpu.roll(h, shift=M - 2, axis=0)         # nxt[r] = h[r + 2]
    nxt = jnp.where(seg >= 2 * (seg_len // 2 - 1), 0.0, nxt)
    h = jnp.dot(jnp.concatenate([h, nxt], axis=1), w2_ref[...],
                preferred_element_type=jnp.float32) + b2_ref[...]
    h = jnp.maximum(h, 0.0)               # (M, 128); valid rows: seg % 2 == 0

    # ---- pool2: valid rows -> seg % 4 == 0 --------------------------------
    nxt = pltpu.roll(h, shift=M - 2, axis=0)         # nxt[r] = h[r + 2]
    h = jnp.maximum(h, nxt)

    # ---- conv3 (k=2, padding='same') + ReLU, both taps fused --------------
    nxt = pltpu.roll(h, shift=M - 4, axis=0)         # nxt[r] = h[r + 4]
    nxt = jnp.where(seg >= 4 * (seg_len // 4 - 1), 0.0, nxt)
    h = jnp.dot(jnp.concatenate([h, nxt], axis=1), w3_ref[...],
                preferred_element_type=jnp.float32) + b3_ref[...]
    h = jnp.maximum(h, 0.0)               # (M, 256); valid rows: seg % 4 == 0

    # ---- GAP: per-segment mean over valid rows, fused into one matmul -----
    # pool_ref is (TB, M) with 1/(seg_len//4) at (segment, valid row), else 0.
    feat = jnp.dot(pool_ref[...], h, preferred_element_type=jnp.float32)  # (TB, 256)

    # TODO(synk): nn.Dropout(0.5) is identity at inference; no mask applied.

    # ---- dense head, padded to 128 lanes for a lane-dense unmasked store --
    o_ref[...] = (jnp.dot(feat, wd_ref[...], preferred_element_type=jnp.float32)
                  + bd_ref[...])          # (TB, 128); columns 10.. are zero


# ---------------------------------------------------------------------------
# Wrapper
# ---------------------------------------------------------------------------
def cnn_gap_forward(x, params, *, tb=8, num_classes=10):
    """x: (B, L) float32.  L must be a multiple of 200 (pools divide evenly),
    B must be a multiple of tb.

    tb sizing: M = tb*L1 rows per step.  At these channel widths VMEM use is
    tiny; tb can be pushed to a few hundred on v6e/v5e (128 MiB VMEM) and
    ~256 on v7x (64 MiB VMEM, keep grid >= 2 so both TensorCores get work)."""
    (w1, b1, w2s, b2, w3s, b3, wd, bd) = params
    B, L = x.shape
    K = 50
    assert L % (K * 4) == 0, "L must be a multiple of 200"
    L1 = L // K
    assert B % tb == 0, "B must be a multiple of tb"
    M = tb * L1

    x_r = x.reshape(B * L1, K)                          # glue reshape (host side)

    # Pad the dense head to 128 output lanes -> unmasked full-lane stores.
    wd_pad = jnp.zeros((256, 128), jnp.float32).at[:, :num_classes].set(wd)
    bd_pad = jnp.zeros((1, 128), jnp.float32).at[:, :num_classes].set(bd)

    # Per-segment GAP matrix: (tb, M); selects rows with r % 4 == 0 in each
    # 16-row segment with weight 1/(L1//4).
    r = np.arange(M)
    P = np.zeros((tb, M), np.float32)
    P[r // L1, r] = np.where(r % 4 == 0, 4.0 / L1, 0.0)
    P = jnp.asarray(P)

    kernel = functools.partial(cnn_gap_kernel, seg_len=L1)
    full = lambda i: (0, 0)

    out = pl.pallas_call(
        kernel,
        out_shape=jax.ShapeDtypeStruct((B, 128), jnp.float32),
        grid=(B // tb,),
        in_specs=[
            pl.BlockSpec((M, K), lambda i: (i, 0)),          # x slab
            pl.BlockSpec((K, 64), full),    pl.BlockSpec((1, 64), full),
            pl.BlockSpec((128, 128), full), pl.BlockSpec((1, 128), full),
            pl.BlockSpec((256, 256), full), pl.BlockSpec((1, 256), full),
            pl.BlockSpec((tb, M), full),                     # GAP matrix
            pl.BlockSpec((256, 128), full), pl.BlockSpec((1, 128), full),
        ],
        out_specs=pl.BlockSpec((tb, 128), lambda i: (i, 0)),
        compiler_params=pltpu.CompilerParams(
            dimension_semantics=("parallel",)),
    )(x_r, w1, b1, w2s, b2, w3s, b3, P, wd_pad, bd_pad)

    return out[:, :num_classes]


# ---------------------------------------------------------------------------
# Deterministic parameter init (PyTorch shapes, converted to kernel layout)
# ---------------------------------------------------------------------------
def init_params(key, num_classes=10):
    def uni(k, shape, fan_in):
        bound = 1.0 / np.sqrt(fan_in)
        return jax.random.uniform(k, shape, jnp.float32, -bound, bound)

    ks = jax.random.split(key, 8)
    w1 = uni(ks[0], (64, 1, 50), 50)             # Conv1d(1, 64, 50, 50)
    b1 = uni(ks[1], (64,), 50)
    w2 = uni(ks[2], (128, 64, 2), 128)           # Conv1d(64, 128, 2, 'same')
    b2 = uni(ks[3], (128,), 128)
    w3 = uni(ks[4], (256, 128, 2), 256)          # Conv1d(128, 256, 2, 'same')
    b3 = uni(ks[5], (256,), 256)
    wd = uni(ks[6], (num_classes, 256), 256)     # Linear(256, num_classes)
    bd = uni(ks[7], (num_classes,), 256)

    return (
        jnp.transpose(w1[:, 0, :]),                              # (50, 64)
        b1.reshape(1, 64),
        jnp.concatenate([jnp.transpose(w2[:, :, 0]),             # taps stacked
                         jnp.transpose(w2[:, :, 1])], axis=0),   # (128, 128)
        b2.reshape(1, 128),
        jnp.concatenate([jnp.transpose(w3[:, :, 0]),
                         jnp.transpose(w3[:, :, 1])], axis=0),   # (256, 256)
        b3.reshape(1, 256),
        jnp.transpose(wd),                                       # (256, 10)
        bd.reshape(1, num_classes),
    )


# ---------------------------------------------------------------------------
# Plain-JAX reference (same semantics as the PyTorch forward, eval mode)
# ---------------------------------------------------------------------------
def reference(x, params):
    (w1, b1, w2s, b2, w3s, b3, wd, bd) = params
    B, L = x.shape
    xr = x.reshape(B, L // 50, 50)
    h = jax.nn.relu(xr @ w1 + b1)                              # (B, L1, 64)
    h = jnp.max(h.reshape(B, -1, 2, h.shape[-1]), axis=2)      # pool1

    def sconv(h, ws, b):  # kernel=2, 'same' (zero pad on the right)
        c = ws.shape[0] // 2
        hn = jnp.concatenate([h[:, 1:], jnp.zeros_like(h[:, :1])], axis=1)
        return h @ ws[:c] + hn @ ws[c:] + b

    h = jax.nn.relu(sconv(h, w2s, b2))
    h = jnp.max(h.reshape(B, -1, 2, h.shape[-1]), axis=2)      # pool2
    h = jax.nn.relu(sconv(h, w3s, b3))
    feat = jnp.mean(h, axis=1)                                 # GAP
    return feat @ wd + bd


if __name__ == "__main__":
    key = jax.random.PRNGKey(0)
    kx, kp = jax.random.split(key)

    B, L = 16, 800                 # L1 = 16 patches; pools -> 8 -> 4 valid rows
    TB = 8                         # batch elements per grid step; grid = (2,)
    x = jax.random.normal(kx, (B, L), dtype=jnp.float32)
    params = init_params(kp)

    out = cnn_gap_forward(x, params, tb=TB)
    out = jax.block_until_ready(out)

    ref = jax.block_until_ready(reference(x, params))
    np.testing.assert_allclose(np.asarray(out), np.asarray(ref),
                               rtol=2e-2, atol=2e-2)
    assert out.shape == (B, 10)

    print("KERNEL_OK")
</pallas_src>

<mosaic_0001>
module attributes {stable_mosaic.version = 11 : i64} {
  func.func @cnn_gap_kernel(%arg0: i32, %arg1: memref<128x50xf32, #tpu.memory_space<vmem>>, %arg2: memref<50x64xf32, #tpu.memory_space<vmem>>, %arg3: memref<1x64xf32, #tpu.memory_space<vmem>>, %arg4: memref<128x128xf32, #tpu.memory_space<vmem>>, %arg5: memref<1x128xf32, #tpu.memory_space<vmem>>, %arg6: memref<256x256xf32, #tpu.memory_space<vmem>>, %arg7: memref<1x256xf32, #tpu.memory_space<vmem>>, %arg8: memref<8x128xf32, #tpu.memory_space<vmem>>, %arg9: memref<256x128xf32, #tpu.memory_space<vmem>>, %arg10: memref<1x128xf32, #tpu.memory_space<vmem>>, %arg11: memref<8x128xf32, #tpu.memory_space<vmem>>) attributes {dimension_semantics = [#tpu.dimension_semantics<parallel>], iteration_bounds = array<i64: 2>, scalar_prefetch = 0 : i64, scratch_operands = 0 : i64, tpu.core_type = #tpu.core_type<tc>, window_params = [{transform_indices = @transform_0, window_bounds = array<i64: 128, 50>}, {pipeline_mode = #tpu.pipeline_mode<synchronous>, transform_indices = @transform_1, window_bounds = array<i64: 50, 64>}, {pipeline_mode = #tpu.pipeline_mode<synchronous>, transform_indices = @transform_2, window_bounds = array<i64: 1, 64>}, {pipeline_mode = #tpu.pipeline_mode<synchronous>, transform_indices = @transform_3, window_bounds = array<i64: 128, 128>}, {pipeline_mode = #tpu.pipeline_mode<synchronous>, transform_indices = @transform_4, window_bounds = array<i64: 1, 128>}, {pipeline_mode = #tpu.pipeline_mode<synchronous>, transform_indices = @transform_5, window_bounds = array<i64: 256, 256>}, {pipeline_mode = #tpu.pipeline_mode<synchronous>, transform_indices = @transform_6, window_bounds = array<i64: 1, 256>}, {pipeline_mode = #tpu.pipeline_mode<synchronous>, transform_indices = @transform_7, window_bounds = array<i64: 8, 128>}, {pipeline_mode = #tpu.pipeline_mode<synchronous>, transform_indices = @transform_8, window_bounds = array<i64: 256, 128>}, {pipeline_mode = #tpu.pipeline_mode<synchronous>, transform_indices = @transform_9, window_bounds = array<i64: 1, 128>}, {transform_indices = @transform_10, window_bounds = array<i64: 8, 128>}]} {
    %c0 = arith.constant 0 : index
    %c0_0 = arith.constant 0 : index
    %0 = vector.load %arg1[%c0, %c0_0] : memref<128x50xf32, #tpu.memory_space<vmem>>, vector<128x50xf32>
    %1 = tpu.iota {dimensions = array<i32: 0>} : vector<128x1xi32>
    %c16_i32 = arith.constant 16 : i32
    %c0_i32 = arith.constant 0 : i32
    %2 = arith.cmpi eq, %c16_i32, %c0_i32 : i32
    %c1_i32 = arith.constant 1 : i32
    %3 = arith.select %2, %c1_i32, %c16_i32 : i32
    %4 = vector.broadcast %3 : i32 to vector<128x1xi32>
    %5 = arith.remsi %1, %4 : vector<128x1xi32>
    %c0_i32_1 = arith.constant 0 : i32
    %6 = vector.broadcast %c0_i32_1 : i32 to vector<128x1xi32>
    %7 = arith.cmpi ne, %5, %6 : vector<128x1xi32>
    %c0_i32_2 = arith.constant 0 : i32
    %8 = vector.broadcast %c0_i32_2 : i32 to vector<128x1xi32>
    %9 = arith.cmpi slt, %5, %8 : vector<128x1xi32>
    %c0_i32_3 = arith.constant 0 : i32
    %10 = arith.cmpi slt, %3, %c0_i32_3 : i32
    %11 = vector.broadcast %10 : i1 to vector<128x1xi1>
    %12 = vector.broadcast %11 : vector<128x1xi1> to vector<128x1xi1>
    %13 = arith.xori %9, %12 : vector<128x1xi1>
    %14 = arith.andi %13, %7 : vector<128x1xi1>
    %15 = vector.broadcast %3 : i32 to vector<128x1xi32>
    %16 = arith.addi %5, %15 : vector<128x1xi32>
    %17 = arith.select %14, %16, %5 : vector<128x1xi1>, vector<128x1xi32>
    %c0_4 = arith.constant 0 : index
    %c0_5 = arith.constant 0 : index
    %18 = vector.load %arg2[%c0_4, %c0_5] : memref<50x64xf32, #tpu.memory_space<vmem>>, vector<50x64xf32>
    %cst = arith.constant dense<0.000000e+00> : vector<128x64xf32>
    %19 = tpu.matmul %0, %18, %cst {dimension_numbers = #tpu.dot_dimension_numbers<[1], [0], [0], [1], [0, 0, 1, 1], [], []>} : vector<128x50xf32>, vector<50x64xf32>, vector<128x64xf32> -> vector<128x64xf32>
    %c0_6 = arith.constant 0 : index
    %c0_7 = arith.constant 0 : index
    %20 = vector.load %arg3[%c0_6, %c0_7] : memref<1x64xf32, #tpu.memory_space<vmem>>, vector<1x64xf32>
    %21 = vector.broadcast %20 : vector<1x64xf32> to vector<128x64xf32>
    %22 = arith.addf %19, %21 : vector<128x64xf32>
    %cst_8 = arith.constant 0.000000e+00 : f32
    %23 = vector.broadcast %cst_8 : f32 to vector<128x64xf32>
    %24 = arith.maximumf %22, %23 : vector<128x64xf32>
    %c127_i32 = arith.constant 127 : i32
    %25 = tpu.dynamic_rotate %24 by %c127_i32 dim 0 : vector<128x64xf32>, i32 -> vector<128x64xf32>
    %26 = arith.maximumf %24, %25 : vector<128x64xf32>
    %c126_i32 = arith.constant 126 : i32
    %27 = tpu.dynamic_rotate %26 by %c126_i32 dim 0 : vector<128x64xf32>, i32 -> vector<128x64xf32>
    %c14_i32 = arith.constant 14 : i32
    %28 = vector.broadcast %c14_i32 : i32 to vector<128x1xi32>
    %29 = arith.cmpi sge, %17, %28 : vector<128x1xi32>
    %cst_9 = arith.constant 0.000000e+00 : f32
    %30 = vector.shape_cast %29 : vector<128x1xi1> to vector<128x1xi1>
    %31 = vector.broadcast %30 : vector<128x1xi1> to vector<128x64xi1>
    %32 = vector.broadcast %cst_9 : f32 to vector<128x64xf32>
    %33 = arith.select %31, %32, %27 : vector<128x64xi1>, vector<128x64xf32>
    %34 = tpu.concatenate %26, %33 in 1 : vector<128x64xf32>, vector<128x64xf32> -> vector<128x128xf32>
    %c0_10 = arith.constant 0 : index
    %c0_11 = arith.constant 0 : index
    %35 = vector.load %arg4[%c0_10, %c0_11] : memref<128x128xf32, #tpu.memory_space<vmem>>, vector<128x128xf32>
    %cst_12 = arith.constant dense<0.000000e+00> : vector<128x128xf32>
    %36 = tpu.matmul %34, %35, %cst_12 {dimension_numbers = #tpu.dot_dimension_numbers<[1], [0], [0], [1], [0, 0, 1, 1], [], []>} : vector<128x128xf32>, vector<128x128xf32>, vector<128x128xf32> -> vector<128x128xf32>
    %c0_13 = arith.constant 0 : index
    %c0_14 = arith.constant 0 : index
    %37 = vector.load %arg5[%c0_13, %c0_14] : memref<1x128xf32, #tpu.memory_space<vmem>>, vector<1x128xf32>
    %38 = vector.broadcast %37 : vector<1x128xf32> to vector<128x128xf32>
    %39 = arith.addf %36, %38 : vector<128x128xf32>
    %cst_15 = arith.constant 0.000000e+00 : f32
    %40 = vector.broadcast %cst_15 : f32 to vector<128x128xf32>
    %41 = arith.maximumf %39, %40 : vector<128x128xf32>
    %c126_i32_16 = arith.constant 126 : i32
    %42 = tpu.dynamic_rotate %41 by %c126_i32_16 dim 0 : vector<128x128xf32>, i32 -> vector<128x128xf32>
    %43 = arith.maximumf %41, %42 : vector<128x128xf32>
    %c124_i32 = arith.constant 124 : i32
    %44 = tpu.dynamic_rotate %43 by %c124_i32 dim 0 : vector<128x128xf32>, i32 -> vector<128x128xf32>
    %c12_i32 = arith.constant 12 : i32
    %45 = vector.broadcast %c12_i32 : i32 to vector<128x1xi32>
    %46 = arith.cmpi sge, %17, %45 : vector<128x1xi32>
    %cst_17 = arith.constant 0.000000e+00 : f32
    %47 = vector.shape_cast %46 : vector<128x1xi1> to vector<128x1xi1>
    %48 = vector.broadcast %47 : vector<128x1xi1> to vector<128x128xi1>
    %49 = vector.broadcast %cst_17 : f32 to vector<128x128xf32>
    %50 = arith.select %48, %49, %44 : vector<128x128xi1>, vector<128x128xf32>
    %51 = tpu.concatenate %43, %50 in 1 : vector<128x128xf32>, vector<128x128xf32> -> vector<128x256xf32>
    %c0_18 = arith.constant 0 : index
    %c0_19 = arith.constant 0 : index
    %52 = vector.load %arg6[%c0_18, %c0_19] : memref<256x256xf32, #tpu.memory_space<vmem>>, vector<256x256xf32>
    %cst_20 = arith.constant dense<0.000000e+00> : vector<128x256xf32>
    %53 = tpu.matmul %51, %52, %cst_20 {dimension_numbers = #tpu.dot_dimension_numbers<[1], [0], [0], [1], [0, 0, 1, 1], [], []>} : vector<128x256xf32>, vector<256x256xf32>, vector<128x256xf32> -> vector<128x256xf32>
    %c0_21 = arith.constant 0 : index
    %c0_22 = arith.constant 0 : index
    %54 = vector.load %arg7[%c0_21, %c0_22] : memref<1x256xf32, #tpu.memory_space<vmem>>, vector<1x256xf32>
    %55 = vector.broadcast %54 : vector<1x256xf32> to vector<128x256xf32>
    %56 = arith.addf %53, %55 : vector<128x256xf32>
    %cst_23 = arith.constant 0.000000e+00 : f32
    %57 = vector.broadcast %cst_23 : f32 to vector<128x256xf32>
    %58 = arith.maximumf %56, %57 : vector<128x256xf32>
    %c0_24 = arith.constant 0 : index
    %c0_25 = arith.constant 0 : index
    %59 = vector.load %arg8[%c0_24, %c0_25] : memref<8x128xf32, #tpu.memory_space<vmem>>, vector<8x128xf32>
    %cst_26 = arith.constant dense<0.000000e+00> : vector<8x256xf32>
    %60 = tpu.matmul %59, %58, %cst_26 {dimension_numbers = #tpu.dot_dimension_numbers<[1], [0], [0], [1], [0, 0, 1, 1], [], []>} : vector<8x128xf32>, vector<128x256xf32>, vector<8x256xf32> -> vector<8x256xf32>
    %c0_27 = arith.constant 0 : index
    %c0_28 = arith.constant 0 : index
    %61 = vector.load %arg9[%c0_27, %c0_28] : memref<256x128xf32, #tpu.memory_space<vmem>>, vector<256x128xf32>
    %cst_29 = arith.constant dense<0.000000e+00> : vector<8x128xf32>
    %62 = tpu.matmul %60, %61, %cst_29 {dimension_numbers = #tpu.dot_dimension_numbers<[1], [0], [0], [1], [0, 0, 1, 1], [], []>} : vector<8x256xf32>, vector<256x128xf32>, vector<8x128xf32> -> vector<8x128xf32>
    %c0_30 = arith.constant 0 : index
    %c0_31 = arith.constant 0 : index
    %63 = vector.load %arg10[%c0_30, %c0_31] : memref<1x128xf32, #tpu.memory_space<vmem>>, vector<1x128xf32>
    %64 = vector.broadcast %63 : vector<1x128xf32> to vector<8x128xf32>
    %65 = arith.addf %62, %64 : vector<8x128xf32>
    %c0_32 = arith.constant 0 : index
    %c0_33 = arith.constant 0 : index
    %66 = vector.load %arg11[%c0_32, %c0_33] : memref<8x128xf32, #tpu.memory_space<vmem>>, vector<8x128xf32>
    tpu.vector_store %arg11[%c0_32, %c0_33], %65 {strides = array<i32>} : memref<8x128xf32, #tpu.memory_space<vmem>>, vector<8x128xf32>,
    return
  }
  func.func @transform_0(%arg0: i32) -> (i32, i32) {
    %c0_i32 = arith.constant 0 : i32
    %c0_i32_0 = arith.constant 0 : i32
    return %arg0, %c0_i32 : i32, i32
  }
  func.func @transform_1(%arg0: i32) -> (i32, i32) {
    %c0_i32 = arith.constant 0 : i32
    %c0_i32_0 = arith.constant 0 : i32
    %c0_i32_1 = arith.constant 0 : i32
    return %c0_i32, %c0_i32_0 : i32, i32
  }
  func.func @transform_2(%arg0: i32) -> (i32, i32) {
    %c0_i32 = arith.constant 0 : i32
    %c0_i32_0 = arith.constant 0 : i32
    %c0_i32_1 = arith.constant 0 : i32
    return %c0_i32, %c0_i32_0 : i32, i32
  }
  func.func @transform_3(%arg0: i32) -> (i32, i32) {
    %c0_i32 = arith.constant 0 : i32
    %c0_i32_0 = arith.constant 0 : i32
    %c0_i32_1 = arith.constant 0 : i32
    return %c0_i32, %c0_i32_0 : i32, i32
  }
  func.func @transform_4(%arg0: i32) -> (i32, i32) {
    %c0_i32 = arith.constant 0 : i32
    %c0_i32_0 = arith.constant 0 : i32
    %c0_i32_1 = arith.constant 0 : i32
    return %c0_i32, %c0_i32_0 : i32, i32
  }
  func.func @transform_5(%arg0: i32) -> (i32, i32) {
    %c0_i32 = arith.constant 0 : i32
    %c0_i32_0 = arith.constant 0 : i32
    %c0_i32_1 = arith.constant 0 : i32
    return %c0_i32, %c0_i32_0 : i32, i32
  }
  func.func @transform_6(%arg0: i32) -> (i32, i32) {
    %c0_i32 = arith.constant 0 : i32
    %c0_i32_0 = arith.constant 0 : i32
    %c0_i32_1 = arith.constant 0 : i32
    return %c0_i32, %c0_i32_0 : i32, i32
  }
  func.func @transform_7(%arg0: i32) -> (i32, i32) {
    %c0_i32 = arith.constant 0 : i32
    %c0_i32_0 = arith.constant 0 : i32
    %c0_i32_1 = arith.constant 0 : i32
    return %c0_i32, %c0_i32_0 : i32, i32
  }
  func.func @transform_8(%arg0: i32) -> (i32, i32) {
    %c0_i32 = arith.constant 0 : i32
    %c0_i32_0 = arith.constant 0 : i32
    %c0_i32_1 = arith.constant 0 : i32
    return %c0_i32, %c0_i32_0 : i32, i32
  }
  func.func @transform_9(%arg0: i32) -> (i32, i32) {
    %c0_i32 = arith.constant 0 : i32
    %c0_i32_0 = arith.constant 0 : i32
    %c0_i32_1 = arith.constant 0 : i32
    return %c0_i32, %c0_i32_0 : i32, i32
  }
  func.func @transform_10(%arg0: i32) -> (i32, i32) {
    %c0_i32 = arith.constant 0 : i32
    %c0_i32_0 = arith.constant 0 : i32
    return %arg0, %c0_i32 : i32, i32
  }
}

</mosaic_0001>

<llo_original>
// kernel: tpu_custom_call.1
$region0: #{tpu_custom_call.1}
  #allocation0 [shape = 'u32[]', space=smem, size = 0x4, offset = 0x4, fixed_abs, tag = 'smem constant byte address 0x4 - core index']
  #allocation1 [shape = 'u32[72,128]{1,0:T(1,128)}', space=vmem, size = 0x9000, scoped, tag = 'internal scratch']
  %s0 = inlined_call_operand.vmem [shape: f32[256,50], index: 0, kind: input, shape index: {}]
  %s1 = inlined_call_operand.vmem [shape: f32[50,64], index: 1, kind: input, shape index: {}]
  %s2 = inlined_call_operand.vmem [shape: f32[1,64], index: 2, kind: input, shape index: {}]
  %s3 = inlined_call_operand.hbm [shape: f32[128,128], index: 3, kind: input, shape index: {}]
  %s4 = inlined_call_operand.vmem [shape: f32[1,128], index: 4, kind: input, shape index: {}]
  %s5 = inlined_call_operand.hbm [shape: f32[256,256], index: 5, kind: input, shape index: {}]
  %s6 = inlined_call_operand.vmem [shape: f32[1,256], index: 6, kind: input, shape index: {}]
  %s7 = inlined_call_operand.vmem [shape: f32[8,128], index: 7, kind: input, shape index: {}]
  %s8 = inlined_call_operand.vmem [shape: f32[256,128], index: 8, kind: input, shape index: {}]
  %s9 = inlined_call_operand.vmem [shape: f32[1,128], index: 9, kind: input, shape index: {}]
  %s10 = inlined_call_operand.hbm [shape: f32[16,128], index: 10, kind: output, shape index: {}]
  %s11 = sld [smem:[#allocation0]]
  $region81: #{tpu_custom_call.1} parent=0
    _
  %s13 = ssub.s32 1, %s11
  %s14 = scalar_select 0, %s13, %s11
  $region1: #{tpu_custom_call.1} parent=0
    #allocation2 [shape = 'u8[65536]{0}', space=vmem, size = 0x10000, scoped, tag = 'input window, operand 3, single buffered']
    #allocation3 [shape = 's32[2]{0}', space=sflag, size = 0x8, scoped, tag = 'scoped memory for tpu_custom_call.1']
    #allocation4 [shape = 's32[2]{0}', space=sflag, size = 0x8, scoped, tag = 'scoped memory for tpu_custom_call.1']
    #allocation5 [shape = 'u8[262144]{0}', space=vmem, size = 0x40000, scoped, tag = 'input window, operand 5, single buffered']
    #allocation6 [shape = 's32[1]{0}', space=sflag, size = 0x4, scoped, tag = 'scoped memory for tpu_custom_call.1']
    #allocation7 [shape = 'u8[8192]{0}', space=vmem, size = 0x2000, scoped, tag = 'output window, operand 0']
    %15 = vsyncpa [#allocation3], 0
    %16 = vsyncpa [#allocation6], 0
    %17 = vsyncpa [#allocation4], 0
    %s18 = scalar_lea.sflag [#allocation4], 1
    %19 = vsyncpa %s18, 0
    loop: start=0, step=1, limit=4
    $region2: #{tpu_custom_call.1} parent=1 // loop_pre_header
      _
    $region3: #{tpu_custom_call.1} parent=1 // loop_header
      %s21 = sphi 0, %s25
      %p22 = scmp.ge.s32.totalorder %s21, 4
      %s31 = sphi 0, %s33
      %s34 = sphi 0, %s31
      %s35 = sphi 0, %s34
      %s51 = sphi 0, %s35
      %s55 = sphi 0, %s55
      %s57 = sphi 0, %s55
      %s58 = sphi 0, %s57
      %s72 = sphi 0, %s58
      %s76 = sphi 0, %s76
      %s78 = sphi 0, %s76
      %s79 = sphi 0, %s78
      %s93 = sphi 0, %s79
      %s97 = sphi 0, %s97
      %s99 = sphi 0, %s97
      %s100 = sphi 0, %s99
      %s114 = sphi 0, %s100
      %s118 = sphi 0, %s118
      %s120 = sphi 0, %s118
      %s121 = sphi 0, %s120
      %s135 = sphi 0, %s121
      %s139 = sphi 0, %s139
      %s141 = sphi 0, %s139
      %s142 = sphi 0, %s141
      %s156 = sphi 0, %s142
      %s160 = sphi 0, %s160
      %s162 = sphi 0, %s160
      %s163 = sphi 0, %s162
      %s177 = sphi 0, %s163
      %s181 = sphi 0, %s181
      %s183 = sphi 0, %s181
      %s184 = sphi 0, %s183
      %s198 = sphi 0, %s184
      %s202 = sphi 0, %s202
      %s204 = sphi 0, %s202
      %s205 = sphi 0, %s204
      %s219 = sphi 0, %s205
      %s223 = sphi 0, %s223
      %s225 = sphi 0, %s223
      %s226 = sphi 0, %s225
      %s240 = sphi 0, %s226
      %s246 = sphi 0, %s248
      %s249 = sphi 0, %s246
      %s250 = sphi 0, %s249
      %s266 = sphi 0, %s250
    $region4: #{tpu_custom_call.1} parent=1 // loop_header_branch
      %24 = sbr.rel (%p22) target = $region8
    $region5: #{tpu_custom_call.1} parent=1 // loop_body
      %s26 = ssub.s32 %s21, 1
      %s27 = ssub.s32 %s21, 2
      %s28 = sadd.s32 %s21, 1
      %s29 = ssub.s32 %s21, %s28
      %p30 = scmp.eq.s32.totalorder %s29, 0
      %s32 = sadd.s32 %s31, 1
      %s33 = scalar_select %p30, %s31, %s32
      %p36 = pneg %p30
      %p37 = scmp.eq.s32.totalorder %s21, 1
      %p38 = por %p36, %p37
      %p39 = scmp.ne.s32.totalorder %s31, %s34
      %p40 = scmp.eq.s32.totalorder %s21, 0
      %p41 = por %p39, %p40
      %p42 = scmp.ne.s32.totalorder %s31, %s34
      %p43 = scmp.eq.s32.totalorder %s26, 1
      %p44 = por %p42, %p43
      %p45 = scmp.ne.s32.totalorder %s34, %s35
      %p46 = scmp.eq.s32.totalorder %s26, 0
      %p47 = por %p45, %p46
      %p48 = scmp.ne.s32.totalorder %s34, %s35
      %p49 = scmp.eq.s32.totalorder %s27, 1
      %p50 = por %p48, %p49
      %p52 = scmp.ne.s32.totalorder %s35, %s51
      %p53 = scmp.eq.s32.totalorder %s27, 0
      %p54 = por %p52, %p53
      %s56 = sadd.s32 %s55, 1
      %p59 = scmp.eq.s32.totalorder %s21, 1
      %p60 = scmp.ne.s32.totalorder %s55, %s57
      %p61 = scmp.eq.s32.totalorder %s21, 0
      %p62 = por %p60, %p61
      %p63 = scmp.ne.s32.totalorder %s55, %s57
      %p64 = scmp.eq.s32.totalorder %s26, 1
      %p65 = por %p63, %p64
      %p66 = scmp.ne.s32.totalorder %s57, %s58
      %p67 = scmp.eq.s32.totalorder %s26, 0
      %p68 = por %p66, %p67
      %p69 = scmp.ne.s32.totalorder %s57, %s58
      %p70 = scmp.eq.s32.totalorder %s27, 1
      %p71 = por %p69, %p70
      %p73 = scmp.ne.s32.totalorder %s58, %s72
      %p74 = scmp.eq.s32.totalorder %s27, 0
      %p75 = por %p73, %p74
      %s77 = sadd.s32 %s76, 1
      %p80 = scmp.eq.s32.totalorder %s21, 1
      %p81 = scmp.ne.s32.totalorder %s76, %s78
      %p82 = scmp.eq.s32.totalorder %s21, 0
      %p83 = por %p81, %p82
      %p84 = scmp.ne.s32.totalorder %s76, %s78
      %p85 = scmp.eq.s32.totalorder %s26, 1
      %p86 = por %p84, %p85
      %p87 = scmp.ne.s32.totalorder %s78, %s79
      %p88 = scmp.eq.s32.totalorder %s26, 0
      %p89 = por %p87, %p88
      %p90 = scmp.ne.s32.totalorder %s78, %s79
      %p91 = scmp.eq.s32.totalorder %s27, 1
      %p92 = por %p90, %p91
      %p94 = scmp.ne.s32.totalorder %s79, %s93
      %p95 = scmp.eq.s32.totalorder %s27, 0
      %p96 = por %p94, %p95
      %s98 = sadd.s32 %s97, 1
      %p101 = scmp.eq.s32.totalorder %s21, 1
      %p102 = scmp.ne.s32.totalorder %s97, %s99
      %p103 = scmp.eq.s32.totalorder %s21, 0
      %p104 = por %p102, %p103
      %p105 = scmp.ne.s32.totalorder %s97, %s99
      %p106 = scmp.eq.s32.totalorder %s26, 1
      %p107 = por %p105, %p106
      %p108 = scmp.ne.s32.totalorder %s99, %s100
      %p109 = scmp.eq.s32.totalorder %s26, 0
      %p110 = por %p108, %p109
      %p111 = scmp.ne.s32.totalorder %s99, %s100
      %p112 = scmp.eq.s32.totalorder %s27, 1
      %p113 = por %p111, %p112
      %p115 = scmp.ne.s32.totalorder %s100, %s114
      %p116 = scmp.eq.s32.totalorder %s27, 0
      %p117 = por %p115, %p116
      %s119 = sadd.s32 %s118, 1
      %p122 = scmp.eq.s32.totalorder %s21, 1
      %p123 = scmp.ne.s32.totalorder %s118, %s120
      %p124 = scmp.eq.s32.totalorder %s21, 0
      %p125 = por %p123, %p124
      %p126 = scmp.ne.s32.totalorder %s118, %s120
      %p127 = scmp.eq.s32.totalorder %s26, 1
      %p128 = por %p126, %p127
      %p129 = scmp.ne.s32.totalorder %s120, %s121
      %p130 = scmp.eq.s32.totalorder %s26, 0
      %p131 = por %p129, %p130
      %p132 = scmp.ne.s32.totalorder %s120, %s121
      %p133 = scmp.eq.s32.totalorder %s27, 1
      %p134 = por %p132, %p133
      %p136 = scmp.ne.s32.totalorder %s121, %s135
      %p137 = scmp.eq.s32.totalorder %s27, 0
      %p138 = por %p136, %p137
      %s140 = sadd.s32 %s139, 1
      %p143 = scmp.eq.s32.totalorder %s21, 1
      %p144 = scmp.ne.s32.totalorder %s139, %s141
      %p145 = scmp.eq.s32.totalorder %s21, 0
      %p146 = por %p144, %p145
      %p147 = scmp.ne.s32.totalorder %s139, %s141
      %p148 = scmp.eq.s32.totalorder %s26, 1
      %p149 = por %p147, %p148
      %p150 = scmp.ne.s32.totalorder %s141, %s142
      %p151 = scmp.eq.s32.totalorder %s26, 0
      %p152 = por %p150, %p151
      %p153 = scmp.ne.s32.totalorder %s141, %s142
      %p154 = scmp.eq.s32.totalorder %s27, 1
      %p155 = por %p153, %p154
      %p157 = scmp.ne.s32.totalorder %s142, %s156
      %p158 = scmp.eq.s32.totalorder %s27, 0
      %p159 = por %p157, %p158
      %s161 = sadd.s32 %s160, 1
      %p164 = scmp.eq.s32.totalorder %s21, 1
      %p165 = scmp.ne.s32.totalorder %s160, %s162
      %p166 = scmp.eq.s32.totalorder %s21, 0
      %p167 = por %p165, %p166
      %p168 = scmp.ne.s32.totalorder %s160, %s162
      %p169 = scmp.eq.s32.totalorder %s26, 1
      %p170 = por %p168, %p169
      %p171 = scmp.ne.s32.totalorder %s162, %s163
      %p172 = scmp.eq.s32.totalorder %s26, 0
      %p173 = por %p171, %p172
      %p174 = scmp.ne.s32.totalorder %s162, %s163
      %p175 = scmp.eq.s32.totalorder %s27, 1
      %p176 = por %p174, %p175
      %p178 = scmp.ne.s32.totalorder %s163, %s177
      %p179 = scmp.eq.s32.totalorder %s27, 0
      %p180 = por %p178, %p179
      %s182 = sadd.s32 %s181, 1
      %p185 = scmp.eq.s32.totalorder %s21, 1
      %p186 = scmp.ne.s32.totalorder %s181, %s183
      %p187 = scmp.eq.s32.totalorder %s21, 0
      %p188 = por %p186, %p187
      %p189 = scmp.ne.s32.totalorder %s181, %s183
      %p190 = scmp.eq.s32.totalorder %s26, 1
      %p191 = por %p189, %p190
      %p192 = scmp.ne.s32.totalorder %s183, %s184
      %p193 = scmp.eq.s32.totalorder %s26, 0
      %p194 = por %p192, %p193
      %p195 = scmp.ne.s32.totalorder %s183, %s184
      %p196 = scmp.eq.s32.totalorder %s27, 1
      %p197 = por %p195, %p196
      %p199 = scmp.ne.s32.totalorder %s184, %s198
      %p200 = scmp.eq.s32.totalorder %s27, 0
      %p201 = por %p199, %p200
      %s203 = sadd.s32 %s202, 1
      %p206 = scmp.eq.s32.totalorder %s21, 1
      %p207 = scmp.ne.s32.totalorder %s202, %s204
      %p208 = scmp.eq.s32.totalorder %s21, 0
      %p209 = por %p207, %p208
      %p210 = scmp.ne.s32.totalorder %s202, %s204
      %p211 = scmp.eq.s32.totalorder %s26, 1
      %p212 = por %p210, %p211
      %p213 = scmp.ne.s32.totalorder %s204, %s205
      %p214 = scmp.eq.s32.totalorder %s26, 0
      %p215 = por %p213, %p214
      %p216 = scmp.ne.s32.totalorder %s204, %s205
      %p217 = scmp.eq.s32.totalorder %s27, 1
      %p218 = por %p216, %p217
      %p220 = scmp.ne.s32.totalorder %s205, %s219
      %p221 = scmp.eq.s32.totalorder %s27, 0
      %p222 = por %p220, %p221
      %s224 = sadd.s32 %s223, 1
      %p227 = scmp.eq.s32.totalorder %s21, 1
      %p228 = scmp.ne.s32.totalorder %s223, %s225
      %p229 = scmp.eq.s32.totalorder %s21, 0
      %p230 = por %p228, %p229
      %p231 = scmp.ne.s32.totalorder %s223, %s225
      %p232 = scmp.eq.s32.totalorder %s26, 1
      %p233 = por %p231, %p232
      %p234 = scmp.ne.s32.totalorder %s225, %s226
      %p235 = scmp.eq.s32.totalorder %s26, 0
      %p236 = por %p234, %p235
      %p237 = scmp.ne.s32.totalorder %s225, %s226
      %p238 = scmp.eq.s32.totalorder %s27, 1
      %p239 = por %p237, %p238
      %p241 = scmp.ne.s32.totalorder %s226, %s240
      %p242 = scmp.eq.s32.totalorder %s27, 0
      %p243 = por %p241, %p242
      %s244 = ssub.s32 %s21, %s28
      %p245 = scmp.eq.s32.totalorder %s244, 0
      %s247 = sadd.s32 %s246, 1
      %s248 = scalar_select %p245, %s246, %s247
      %p251 = pneg %p245
      %p252 = scmp.eq.s32.totalorder %s21, 1
      %p253 = por %p251, %p252
      %p254 = scmp.ne.s32.totalorder %s246, %s249
      %p255 = scmp.eq.s32.totalorder %s21, 0
      %p256 = por %p254, %p255
      %p257 = scmp.ne.s32.totalorder %s246, %s249
      %p258 = scmp.eq.s32.totalorder %s26, 1
      %p259 = por %p257, %p258
      %p260 = scmp.ne.s32.totalorder %s249, %s250
      %p261 = scmp.eq.s32.totalorder %s26, 0
      %p262 = por %p260, %p261
      %p263 = scmp.ne.s32.totalorder %s249, %s250
      %p264 = scmp.eq.s32.totalorder %s27, 1
      %p265 = por %p263, %p264
      %p267 = scmp.ne.s32.totalorder %s250, %s266
      %p268 = scmp.eq.s32.totalorder %s27, 0
      %p269 = por %p267, %p268
      %p270 = scmp.le.s32.totalorder 1, %s21
      %p271 = scmp.lt.s32.totalorder %s21, 3
      %p272 = pnand %p270, %p271
      %p273 = pneg %p272
      // Predicated region
      $region9: #{tpu_custom_call.1} parent=5 // pred_check
        _
      $region10: #{tpu_custom_call.1} parent=5 // pred_check_branch
        %275 = sbr.rel (%p272) target = $region12
      $region11: #{tpu_custom_call.1} parent=5 // pred_region
        %s276 = ssub.s32 %s21, 1
        // Predicated region
        $region13: #{tpu_custom_call.1} parent=11 // pred_check
          %p277 = pneg %p68
        $region14: #{tpu_custom_call.1} parent=11 // pred_check_branch
          %279 = sbr.rel (%p277) target = $region16
        $region15: #{tpu_custom_call.1} parent=11 // pred_region
          _
        $region16: #{tpu_custom_call.1} parent=11 // pred_fallthru
          _
        // Predicated region
        $region17: #{tpu_custom_call.1} parent=11 // pred_check
          %p280 = pneg %p89
        $region18: #{tpu_custom_call.1} parent=11 // pred_check_branch
          %282 = sbr.rel (%p280) target = $region20
        $region19: #{tpu_custom_call.1} parent=11 // pred_region
          _
        $region20: #{tpu_custom_call.1} parent=11 // pred_fallthru
          _
        // Predicated region
        $region21: #{tpu_custom_call.1} parent=11 // pred_check
          %p283 = pneg %p110
        $region22: #{tpu_custom_call.1} parent=11 // pred_check_branch
          %285 = sbr.rel (%p283) target = $region24
        $region23: #{tpu_custom_call.1} parent=11 // pred_region
          %287 = vsyncadd [#allocation3], 0
          %s288 = sshll.u32 %s3, 4
          %s289 = int_to_ptr.hbm [resolvable:$true] %s288
          %s290 = sshll.u32 [#allocation2], 4
          %s291 = int_to_ptr.vmem [resolvable:$true] %s290
          %296 = dma.hbm_to_vmem [thread:$0]  %s289, 2048, %s291, [#allocation3], 128, 128, 8
        $region24: #{tpu_custom_call.1} parent=11 // pred_fallthru
          _
        // Predicated region
        $region25: #{tpu_custom_call.1} parent=11 // pred_check
          %p297 = pneg %p131
        $region26: #{tpu_custom_call.1} parent=11 // pred_check_branch
          %299 = sbr.rel (%p297) target = $region28
        $region27: #{tpu_custom_call.1} parent=11 // pred_region
          _
        $region28: #{tpu_custom_call.1} parent=11 // pred_fallthru
          _
        // Predicated region
        $region29: #{tpu_custom_call.1} parent=11 // pred_check
          %p300 = pneg %p152
        $region30: #{tpu_custom_call.1} parent=11 // pred_check_branch
          %302 = sbr.rel (%p300) target = $region32
        $region31: #{tpu_custom_call.1} parent=11 // pred_region
          %304 = vsyncadd [#allocation6], 0
          %s305 = sshll.u32 %s5, 4
          %s306 = int_to_ptr.hbm [resolvable:$true] %s305
          %s307 = sshll.u32 [#allocation5], 4
          %s308 = int_to_ptr.vmem [resolvable:$true] %s307
          %313 = dma.hbm_to_vmem [thread:$0]  %s306, 8192, %s308, [#allocation6], 256, 256, 16
        $region32: #{tpu_custom_call.1} parent=11 // pred_fallthru
          _
        // Predicated region
        $region33: #{tpu_custom_call.1} parent=11 // pred_check
          %p314 = pneg %p173
        $region34: #{tpu_custom_call.1} parent=11 // pred_check_branch
          %316 = sbr.rel (%p314) target = $region36
        $region35: #{tpu_custom_call.1} parent=11 // pred_region
          _
        $region36: #{tpu_custom_call.1} parent=11 // pred_fallthru
          _
        // Predicated region
        $region37: #{tpu_custom_call.1} parent=11 // pred_check
          %p317 = pneg %p194
        $region38: #{tpu_custom_call.1} parent=11 // pred_check_branch
          %319 = sbr.rel (%p317) target = $region40
        $region39: #{tpu_custom_call.1} parent=11 // pred_region
          _
        $region40: #{tpu_custom_call.1} parent=11 // pred_fallthru
          _
        // Predicated region
        $region41: #{tpu_custom_call.1} parent=11 // pred_check
          %p320 = pneg %p215
        $region42: #{tpu_custom_call.1} parent=11 // pred_check_branch
          %322 = sbr.rel (%p320) target = $region44
        $region43: #{tpu_custom_call.1} parent=11 // pred_region
          _
        $region44: #{tpu_custom_call.1} parent=11 // pred_fallthru
          _
        // Predicated region
        $region45: #{tpu_custom_call.1} parent=11 // pred_check
          %p323 = pneg %p236
        $region46: #{tpu_custom_call.1} parent=11 // pred_check_branch
          %325 = sbr.rel (%p323) target = $region48
        $region47: #{tpu_custom_call.1} parent=11 // pred_region
          _
        $region48: #{tpu_custom_call.1} parent=11 // pred_fallthru
          _
      $region12: #{tpu_custom_call.1} parent=5 // pred_fallthru
        _
      %p326 = scmp.lt.s32.totalorder %s21, 2
      // Predicated region
      $region49: #{tpu_custom_call.1} parent=5 // pred_check
        %p327 = pneg %p326
      $region50: #{tpu_custom_call.1} parent=5 // pred_check_branch
        %329 = sbr.rel (%p327) target = $region52
      $region51: #{tpu_custom_call.1} parent=5 // pred_region
        // Predicated region
        $region53: #{tpu_custom_call.1} parent=51 // pred_check
          %p330 = pneg %p41
        $region54: #{tpu_custom_call.1} parent=51 // pred_check_branch
          %332 = sbr.rel (%p330) target = $region56
        $region55: #{tpu_custom_call.1} parent=51 // pred_region
          %s333 = smul.u32 16, %s21
          %p334 = scmp.lt.s32.totalorder %s333, 31
          %s335 = scalar_select %p334, %s333, 31
          %s336 = smul.addr %s335, 8
          %s337 = scalar_lea.vmem %s0, %s336
          %s338 = smul.u32 16, %s21
        $region56: #{tpu_custom_call.1} parent=51 // pred_fallthru
          _
      $region52: #{tpu_custom_call.1} parent=5 // pred_fallthru
        _
      %p339 = scmp.le.s32.totalorder 1, %s21
      %p340 = scmp.lt.s32.totalorder %s21, 3
      %p341 = pnand %p339, %p340
      %p342 = pneg %p341
      // Predicated region
      $region57: #{tpu_custom_call.1} parent=5 // pred_check
        _
      $region58: #{tpu_custom_call.1} parent=5 // pred_check_branch
        %344 = sbr.rel (%p341) target = $region60
      $region59: #{tpu_custom_call.1} parent=5 // pred_region
        %s345 = ssub.s32 %s21, 1
        // Predicated region
        $region61: #{tpu_custom_call.1} parent=59 // pred_check
          %p346 = pneg %p110
        $region62: #{tpu_custom_call.1} parent=59 // pred_check_branch
          %348 = sbr.rel (%p346) target = $region64
        $region63: #{tpu_custom_call.1} parent=59 // pred_region
          %350 = dma.done [#allocation3], 2048
        $region64: #{tpu_custom_call.1} parent=59 // pred_fallthru
          _
        // Predicated region
        $region65: #{tpu_custom_call.1} parent=59 // pred_check
          %p351 = pneg %p152
        $region66: #{tpu_custom_call.1} parent=59 // pred_check_branch
          %353 = sbr.rel (%p351) target = $region68
        $region67: #{tpu_custom_call.1} parent=59 // pred_region
          %355 = dma.done [#allocation6], 8192
        $region68: #{tpu_custom_call.1} parent=59 // pred_fallthru
          _
        %s356 = smul.u32 16, %s26
        %p357 = scmp.lt.s32.totalorder %s356, 31
        %s358 = scalar_select %p357, %s356, 31
        %s359 = smul.addr %s358, 8
        %s360 = scalar_lea.vmem %s0, %s359
        %p361 = pneg %p47
        %p362 = pneg %p44
        %p363 = pneg %p68
        %p364 = pneg %p65
        %p365 = pneg %p89
        %p366 = pneg %p86
        %p367 = pneg %p110
        %p368 = pneg %p107
        %p369 = pneg %p131
        %p370 = pneg %p128
        %p371 = pneg %p152
        %p372 = pneg %p149
        %p373 = pneg %p173
        %p374 = pneg %p170
        %p375 = pneg %p194
        %p376 = pneg %p191
        %p377 = pneg %p215
        %p378 = pneg %p212
        %p379 = pneg %p236
        %p380 = pneg %p233
        %p381 = pneg %p262
        %p382 = pneg %p259
        %s383 = sand.u32 %s249, 1
        %s384 = scalar_lea.sflag [#allocation4], %s383
        %s385 = sand.u32 %s249, 1
        %s386 = smul.addr %s385, 8
        %s387 = scalar_lea.vmem [#allocation7], %s386
        %s388 = smul.u32 16, %s26
        %p389 = scmp.lt.s32.totalorder %s388, 31
        %s390 = scalar_select %p389, %s388, 31
        %s391 = smul.addr %s390, 8
        %s392 = scalar_lea.vmem %s0, %s391
        %s393 = smul.u32 16, %s26
        %v394 = vld [vmem:[%s392] sm:$0xff]
        %v395 = vld [vmem:[%s392 + $0x8] sm:$0xff]
        %v396 = vld [vmem:[%s392 + $0x10] sm:$0xff]
        %v397 = vld [vmem:[%s392 + $0x18] sm:$0xff]
        %v398 = vld [vmem:[%s392 + $0x20] sm:$0xff]
        %v399 = vld [vmem:[%s392 + $0x28] sm:$0xff]
        %v400 = vld [vmem:[%s392 + $0x30] sm:$0xff]
        %v401 = vld [vmem:[%s392 + $0x38] sm:$0xff]
        %v402 = vld [vmem:[%s392 + $0x40] sm:$0xff]
        %v403 = vld [vmem:[%s392 + $0x48] sm:$0xff]
        %v404 = vld [vmem:[%s392 + $0x50] sm:$0xff]
        %v405 = vld [vmem:[%s392 + $0x58] sm:$0xff]
        %v406 = vld [vmem:[%s392 + $0x60] sm:$0xff]
        %v407 = vld [vmem:[%s392 + $0x68] sm:$0xff]
        %v408 = vld [vmem:[%s392 + $0x70] sm:$0xff]
        %v409 = vld [vmem:[%s392 + $0x78] sm:$0xff]
        %v410 = vlaneseq
        %v411 = vshrl.u32 %v410, 7
        %v412 = vadd.s32 %v411, 8
        %v413 = vadd.s32 %v411, 16
        %v414 = vadd.s32 %v411, 24
        %v415 = vadd.s32 %v411, 32
        %v416 = vadd.s32 %v411, 40
        %v417 = vadd.s32 %v411, 48
        %v418 = vadd.s32 %v411, 56
        %v419 = vadd.s32 %v411, 64
        %v420 = vadd.s32 %v411, 72
        %v421 = vadd.s32 %v411, 80
        %v422 = vadd.s32 %v411, 88
        %v423 = vadd.s32 %v411, 96
        %v424 = vadd.s32 %v411, 104
        %v425 = vadd.s32 %v411, 112
        %v426 = vadd.s32 %v411, 120
        %vm427 = vcmp.lt.s32.totalorder %v411, 0
        %v428 = vsub.s32 0, %v411
        %v429 = vsel %vm427, %v428, %v411
        %v430 = vshrl.u32 %v429, 4
        %v431 = vand.u32 %v429, 15
        %v432 = vsub.s32 0, %v431
        %v433 = vsel %vm427, %v432, %v431
        %vm434 = vcmp.lt.s32.totalorder %v412, 0
        %v435 = vsub.s32 0, %v412
        %v436 = vsel %vm434, %v435, %v412
        %v437 = vshrl.u32 %v436, 4
        %v438 = vand.u32 %v436, 15
        %v439 = vsub.s32 0, %v438
        %v440 = vsel %vm434, %v439, %v438
        %vm441 = vcmp.lt.s32.totalorder %v413, 0
        %v442 = vsub.s32 0, %v413
        %v443 = vsel %vm441, %v442, %v413
        %v444 = vshrl.u32 %v443, 4
        %v445 = vand.u32 %v443, 15
        %v446 = vsub.s32 0, %v445
        %v447 = vsel %vm441, %v446, %v445
        %vm448 = vcmp.lt.s32.totalorder %v414, 0
        %v449 = vsub.s32 0, %v414
        %v450 = vsel %vm448, %v449, %v414
        %v451 = vshrl.u32 %v450, 4
        %v452 = vand.u32 %v450, 15
        %v453 = vsub.s32 0, %v452
        %v454 = vsel %vm448, %v453, %v452
        %vm455 = vcmp.lt.s32.totalorder %v415, 0
        %v456 = vsub.s32 0, %v415
        %v457 = vsel %vm455, %v456, %v415
        %v458 = vshrl.u32 %v457, 4
        %v459 = vand.u32 %v457, 15
        %v460 = vsub.s32 0, %v459
        %v461 = vsel %vm455, %v460, %v459
        %vm462 = vcmp.lt.s32.totalorder %v416, 0
        %v463 = vsub.s32 0, %v416
        %v464 = vsel %vm462, %v463, %v416
        %v465 = vshrl.u32 %v464, 4
        %v466 = vand.u32 %v464, 15
        %v467 = vsub.s32 0, %v466
        %v468 = vsel %vm462, %v467, %v466
        %vm469 = vcmp.lt.s32.totalorder %v417, 0
        %v470 = vsub.s32 0, %v417
        %v471 = vsel %vm469, %v470, %v417
        %v472 = vshrl.u32 %v471, 4
        %v473 = vand.u32 %v471, 15
        %v474 = vsub.s32 0, %v473
        %v475 = vsel %vm469, %v474, %v473
        %vm476 = vcmp.lt.s32.totalorder %v418, 0
        %v477 = vsub.s32 0, %v418
        %v478 = vsel %vm476, %v477, %v418
        %v479 = vshrl.u32 %v478, 4
        %v480 = vand.u32 %v478, 15
        %v481 = vsub.s32 0, %v480
        %v482 = vsel %vm476, %v481, %v480
        %vm483 = vcmp.lt.s32.totalorder %v419, 0
        %v484 = vsub.s32 0, %v419
        %v485 = vsel %vm483, %v484, %v419
        %v486 = vshrl.u32 %v485, 4
        %v487 = vand.u32 %v485, 15
        %v488 = vsub.s32 0, %v487
        %v489 = vsel %vm483, %v488, %v487
        %vm490 = vcmp.lt.s32.totalorder %v420, 0
        %v491 = vsub.s32 0, %v420
        %v492 = vsel %vm490, %v491, %v420
        %v493 = vshrl.u32 %v492, 4
        %v494 = vand.u32 %v492, 15
        %v495 = vsub.s32 0, %v494
        %v496 = vsel %vm490, %v495, %v494
        %vm497 = vcmp.lt.s32.totalorder %v421, 0
        %v498 = vsub.s32 0, %v421
        %v499 = vsel %vm497, %v498, %v421
        %v500 = vshrl.u32 %v499, 4
        %v501 = vand.u32 %v499, 15
        %v502 = vsub.s32 0, %v501
        %v503 = vsel %vm497, %v502, %v501
        %vm504 = vcmp.lt.s32.totalorder %v422, 0
        %v505 = vsub.s32 0, %v422
        %v506 = vsel %vm504, %v505, %v422
        %v507 = vshrl.u32 %v506, 4
        %v508 = vand.u32 %v506, 15
        %v509 = vsub.s32 0, %v508
        %v510 = vsel %vm504, %v509, %v508
        %vm511 = vcmp.lt.s32.totalorder %v423, 0
        %v512 = vsub.s32 0, %v423
        %v513 = vsel %vm511, %v512, %v423
        %v514 = vshrl.u32 %v513, 4
        %v515 = vand.u32 %v513, 15
        %v516 = vsub.s32 0, %v515
        %v517 = vsel %vm511, %v516, %v515
        %vm518 = vcmp.lt.s32.totalorder %v424, 0
        %v519 = vsub.s32 0, %v424
        %v520 = vsel %vm518, %v519, %v424
        %v521 = vshrl.u32 %v520, 4
        %v522 = vand.u32 %v520, 15
        %v523 = vsub.s32 0, %v522
        %v524 = vsel %vm518, %v523, %v522
        %vm525 = vcmp.lt.s32.totalorder %v425, 0
        %v526 = vsub.s32 0, %v425
        %v527 = vsel %vm525, %v526, %v425
        %v528 = vshrl.u32 %v527, 4
        %v529 = vand.u32 %v527, 15
        %v530 = vsub.s32 0, %v529
        %v531 = vsel %vm525, %v530, %v529
        %vm532 = vcmp.lt.s32.totalorder %v426, 0
        %v533 = vsub.s32 0, %v426
        %v534 = vsel %vm532, %v533, %v426
        %v535 = vshrl.u32 %v534, 4
        %v536 = vand.u32 %v534, 15
        %v537 = vsub.s32 0, %v536
        %v538 = vsel %vm532, %v537, %v536
        %vm539 = vcmp.ne.s32.totalorder %v433, 0
        %vm540 = vcmp.ne.s32.totalorder %v440, 0
        %vm541 = vcmp.ne.s32.totalorder %v447, 0
        %vm542 = vcmp.ne.s32.totalorder %v454, 0
        %vm543 = vcmp.ne.s32.totalorder %v461, 0
        %vm544 = vcmp.ne.s32.totalorder %v468, 0
        %vm545 = vcmp.ne.s32.totalorder %v475, 0
        %vm546 = vcmp.ne.s32.totalorder %v482, 0
        %vm547 = vcmp.ne.s32.totalorder %v489, 0
        %vm548 = vcmp.ne.s32.totalorder %v496, 0
        %vm549 = vcmp.ne.s32.totalorder %v503, 0
        %vm550 = vcmp.ne.s32.totalorder %v510, 0
        %vm551 = vcmp.ne.s32.totalorder %v517, 0
        %vm552 = vcmp.ne.s32.totalorder %v524, 0
        %vm553 = vcmp.ne.s32.totalorder %v531, 0
        %vm554 = vcmp.ne.s32.totalorder %v538, 0
        %vm555 = vcmp.lt.s32.totalorder %v433, 0
        %vm556 = vcmp.lt.s32.totalorder %v440, 0
        %vm557 = vcmp.lt.s32.totalorder %v447, 0
        %vm558 = vcmp.lt.s32.totalorder %v454, 0
        %vm559 = vcmp.lt.s32.totalorder %v461, 0
        %vm560 = vcmp.lt.s32.totalorder %v468, 0
        %vm561 = vcmp.lt.s32.totalorder %v475, 0
        %vm562 = vcmp.lt.s32.totalorder %v482, 0
        %vm563 = vcmp.lt.s32.totalorder %v489, 0
        %vm564 = vcmp.lt.s32.totalorder %v496, 0
        %vm565 = vcmp.lt.s32.totalorder %v503, 0
        %vm566 = vcmp.lt.s32.totalorder %v510, 0
        %vm567 = vcmp.lt.s32.totalorder %v517, 0
        %vm568 = vcmp.lt.s32.totalorder %v524, 0
        %vm569 = vcmp.lt.s32.totalorder %v531, 0
        %vm570 = vcmp.lt.s32.totalorder %v538, 0
        %vm571 = vmand %vm555, %vm539
        %vm572 = vmand %vm556, %vm540
        %vm573 = vmand %vm557, %vm541
        %vm574 = vmand %vm558, %vm542
        %vm575 = vmand %vm559, %vm543
        %vm576 = vmand %vm560, %vm544
        %vm577 = vmand %vm561, %vm545
        %vm578 = vmand %vm562, %vm546
        %vm579 = vmand %vm563, %vm547
        %vm580 = vmand %vm564, %vm548
        %vm581 = vmand %vm565, %vm549
        %vm582 = vmand %vm566, %vm550
        %vm583 = vmand %vm567, %vm551
        %vm584 = vmand %vm568, %vm552
        %vm585 = vmand %vm569, %vm553
        %vm586 = vmand %vm570, %vm554
        %v587 = vadd.s32 %v433, 16
        %v588 = vadd.s32 %v440, 16
        %v589 = vadd.s32 %v447, 16
        %v590 = vadd.s32 %v454, 16
        %v591 = vadd.s32 %v461, 16
        %v592 = vadd.s32 %v468, 16
        %v593 = vadd.s32 %v475, 16
        %v594 = vadd.s32 %v482, 16
        %v595 = vadd.s32 %v489, 16
        %v596 = vadd.s32 %v496, 16
        %v597 = vadd.s32 %v503, 16
        %v598 = vadd.s32 %v510, 16
        %v599 = vadd.s32 %v517, 16
        %v600 = vadd.s32 %v524, 16
        %v601 = vadd.s32 %v531, 16
        %v602 = vadd.s32 %v538, 16
        %v603 = vsel %vm571, %v587, %v433
        %v604 = vsel %vm572, %v588, %v440
        %v605 = vsel %vm573, %v589, %v447
        %v606 = vsel %vm574, %v590, %v454
        %v607 = vsel %vm575, %v591, %v461
        %v608 = vsel %vm576, %v592, %v468
        %v609 = vsel %vm577, %v593, %v475
        %v610 = vsel %vm578, %v594, %v482
        %v611 = vsel %vm579, %v595, %v489
        %v612 = vsel %vm580, %v596, %v496
        %v613 = vsel %vm581, %v597, %v503
        %v614 = vsel %vm582, %v598, %v510
        %v615 = vsel %vm583, %v599, %v517
        %v616 = vsel %vm584, %v600, %v524
        %v617 = vsel %vm585, %v601, %v531
        %v618 = vsel %vm586, %v602, %v538
        %v619 = vld [vmem:[%s1] sm:$0xff]
        %v620 = vld [vmem:[%s1 + $0x8] sm:$0xff]
        %v621 = vld [vmem:[%s1 + $0x10] sm:$0xff]
        %v622 = vld [vmem:[%s1 + $0x18] sm:$0xff]
        %v623 = vld [vmem:[%s1 + $0x20] sm:$0xff]
        %v624 = vld [vmem:[%s1 + $0x28] sm:$0xff]
        %v625 = vld [vmem:[%s1 + $0x30] sm:$0x3]
        %v626 = vld [vmem:[%s2] sm:$0x1]
        %v628 = vperm.slane %v626, 0
        %vm630 = vcmask 408576
        %v632 = vsel %vm630, %v394, 0
        %v635 = vsel %vm630, %v395, 0
        %v638 = vsel %vm630, %v396, 0
        %v641 = vsel %vm630, %v397, 0
        %v644 = vsel %vm630, %v398, 0
        %v647 = vsel %vm630, %v399, 0
        %v650 = vsel %vm630, %v400, 0
        %v653 = vsel %vm630, %v401, 0
        %v656 = vsel %vm630, %v402, 0
        %v659 = vsel %vm630, %v403, 0
        %v662 = vsel %vm630, %v404, 0
        %v665 = vsel %vm630, %v405, 0
        %v668 = vsel %vm630, %v406, 0
        %v671 = vsel %vm630, %v407, 0
        %v674 = vsel %vm630, %v408, 0
        %v677 = vsel %vm630, %v409, 0
        %vm679 = vcmask 1041408
        %v681 = vsel %vm679, %v625, 0
        %683 = vmatpush.msra.mxu0 0.0
        %684 = vmatpush.msra.mxu0 0.0
        %685 = vmatpush.msra.mxu0 0.0
        %686 = vmatpush.msra.mxu0 0.0
        %687 = vmatpush.msra.mxu0 0.0
        %688 = vmatpush.msra.mxu0 0.0
        %689 = vmatpush.msra.mxu0 0.0
        %690 = vmatpush.msra.mxu0 0.0
        %691 = vmatpush.msra.mxu0 0.0
        %692 = vmatpush.msra.mxu0 %v681
        %693 = vmatpush.msra.mxu0 %v624
        %694 = vmatpush.msra.mxu0 %v623
        %695 = vmatpush.msra.mxu0 %v622
        %696 = vmatpush.msra.mxu0 %v621
        %697 = vmatpush.msra.mxu0 %v620
        %698 = vmatpush.msra.mxu0 %v619
        %699 = vmatmul.f32.gmra.mxu0 %v632
        %v700 = vpop.f32.mrf.mxu0
        %v701 = vadd.f32 %v628, %v700
        %702 = vmatmul.f32.gmra.mxu0 %v635
        %v703 = vpop.f32.mrf.mxu0
        %v704 = vadd.f32 %v628, %v703
        %705 = vmatmul.f32.gmra.mxu0 %v638
        %v706 = vpop.f32.mrf.mxu0
        %v707 = vadd.f32 %v628, %v706
        %708 = vmatmul.f32.gmra.mxu0 %v641
        %v709 = vpop.f32.mrf.mxu0
        %v710 = vadd.f32 %v628, %v709
        %711 = vmatmul.f32.gmra.mxu0 %v644
        %v712 = vpop.f32.mrf.mxu0
        %v713 = vadd.f32 %v628, %v712
        %714 = vmatmul.f32.gmra.mxu0 %v647
        %v715 = vpop.f32.mrf.mxu0
        %v716 = vadd.f32 %v628, %v715
        %717 = vmatmul.f32.gmra.mxu0 %v650
        %v718 = vpop.f32.mrf.mxu0
        %v719 = vadd.f32 %v628, %v718
        %720 = vmatmul.f32.gmra.mxu0 %v653
        %v721 = vpop.f32.mrf.mxu0
        %v722 = vadd.f32 %v628, %v721
        %723 = vmatmul.f32.gmra.mxu0 %v656
        %v724 = vpop.f32.mrf.mxu0
        %v725 = vadd.f32 %v628, %v724
        %726 = vmatmul.f32.gmra.mxu0 %v659
        %v727 = vpop.f32.mrf.mxu0
        %v728 = vadd.f32 %v628, %v727
        %729 = vmatmul.f32.gmra.mxu0 %v662
        %v730 = vpop.f32.mrf.mxu0
        %v731 = vadd.f32 %v628, %v730
        %732 = vmatmul.f32.gmra.mxu0 %v665
        %v733 = vpop.f32.mrf.mxu0
        %v734 = vadd.f32 %v628, %v733
        %735 = vmatmul.f32.gmra.mxu0 %v668
        %v736 = vpop.f32.mrf.mxu0
        %v737 = vadd.f32 %v628, %v736
        %738 = vmatmul.f32.gmra.mxu0 %v671
        %v739 = vpop.f32.mrf.mxu0
        %v740 = vadd.f32 %v628, %v739
        %741 = vmatmul.f32.gmra.mxu0 %v674
        %v742 = vpop.f32.mrf.mxu0
        %v743 = vadd.f32 %v628, %v742
        %744 = vmatmul.f32.gmra.mxu0 %v677
        %v745 = vpop.f32.mrf.mxu0
        %v746 = vadd.f32 %v628, %v745
        %747 = vdwg.mxu0
        %v748 = vmax.f32 %v701, 0.0
        %v749 = vmax.f32 %v704, 0.0
        %v750 = vmax.f32 %v707, 0.0
        %v751 = vmax.f32 %v710, 0.0
        %v752 = vmax.f32 %v713, 0.0
        %v753 = vmax.f32 %v716, 0.0
        %v754 = vmax.f32 %v719, 0.0
        %v755 = vmax.f32 %v722, 0.0
        %v756 = vmax.f32 %v725, 0.0
        %v757 = vmax.f32 %v728, 0.0
        %v758 = vmax.f32 %v731, 0.0
        %v759 = vmax.f32 %v734, 0.0
        %v760 = vmax.f32 %v737, 0.0
        %v761 = vmax.f32 %v740, 0.0
        %v762 = vmax.f32 %v743, 0.0
        %v763 = vmax.f32 %v746, 0.0
        %v764 = vrot.slane %v748, 1
        %v765 = vrot.slane %v749, 1
        %v766 = vrot.slane %v750, 1
        %v767 = vrot.slane %v751, 1
        %v768 = vrot.slane %v752, 1
        %v769 = vrot.slane %v753, 1
        %v770 = vrot.slane %v754, 1
        %v771 = vrot.slane %v755, 1
        %v772 = vrot.slane %v756, 1
        %v773 = vrot.slane %v757, 1
        %v774 = vrot.slane %v758, 1
        %v775 = vrot.slane %v759, 1
        %v776 = vrot.slane %v760, 1
        %v777 = vrot.slane %v761, 1
        %v778 = vrot.slane %v762, 1
        %v779 = vrot.slane %v763, 1
        %vm780 = vcmp.lt.s32.totalorder %v411, 7
        %v781 = vsel %vm780, %v778, %v779
        %v782 = vsel %vm780, %v777, %v778
        %v783 = vsel %vm780, %v776, %v777
        %v784 = vsel %vm780, %v775, %v776
        %v785 = vsel %vm780, %v774, %v775
        %v786 = vsel %vm780, %v773, %v774
        %v787 = vsel %vm780, %v772, %v773
        %v788 = vsel %vm780, %v771, %v772
        %v789 = vsel %vm780, %v770, %v771
        %v790 = vsel %vm780, %v769, %v770
        %v791 = vsel %vm780, %v768, %v769
        %v792 = vsel %vm780, %v767, %v768
        %v793 = vsel %vm780, %v766, %v767
        %v794 = vsel %vm780, %v765, %v766
        %v795 = vsel %vm780, %v764, %v765
        %v796 = vsel %vm780, %v779, %v764
        %v797 = vmax.f32 %v748, %v795
        %v798 = vmax.f32 %v749, %v794
        %v799 = vmax.f32 %v750, %v793
        %v800 = vmax.f32 %v751, %v792
        %v801 = vmax.f32 %v752, %v791
        %v802 = vmax.f32 %v753, %v790
        %v803 = vmax.f32 %v754, %v789
        %v804 = vmax.f32 %v755, %v788
        %v805 = vmax.f32 %v756, %v787
        %v806 = vmax.f32 %v757, %v786
        %v807 = vmax.f32 %v758, %v785
        %v808 = vmax.f32 %v759, %v784
        %v809 = vmax.f32 %v760, %v783
        %v810 = vmax.f32 %v761, %v782
        %v811 = vmax.f32 %v762, %v781
        %v812 = vmax.f32 %v763, %v796
        %v813 = vrot.slane %v797, 2
        %v814 = vrot.slane %v798, 2
        %v815 = vrot.slane %v799, 2
        %v816 = vrot.slane %v800, 2
        %v817 = vrot.slane %v801, 2
        %v818 = vrot.slane %v802, 2
        %v819 = vrot.slane %v803, 2
        %v820 = vrot.slane %v804, 2
        %v821 = vrot.slane %v805, 2
        %v822 = vrot.slane %v806, 2
        %v823 = vrot.slane %v807, 2
        %v824 = vrot.slane %v808, 2
        %v825 = vrot.slane %v809, 2
        %v826 = vrot.slane %v810, 2
        %v827 = vrot.slane %v811, 2
        %v828 = vrot.slane %v812, 2
        %vm829 = vcmp.lt.s32.totalorder %v411, 6
        %v830 = vsel %vm829, %v827, %v828
        %v831 = vsel %vm829, %v826, %v827
        %v832 = vsel %vm829, %v825, %v826
        %v833 = vsel %vm829, %v824, %v825
        %v834 = vsel %vm829, %v823, %v824
        %v835 = vsel %vm829, %v822, %v823
        %v836 = vsel %vm829, %v821, %v822
        %v837 = vsel %vm829, %v820, %v821
        %v838 = vsel %vm829, %v819, %v820
        %v839 = vsel %vm829, %v818, %v819
        %v840 = vsel %vm829, %v817, %v818
        %v841 = vsel %vm829, %v816, %v817
        %v842 = vsel %vm829, %v815, %v816
        %v843 = vsel %vm829, %v814, %v815
        %v844 = vsel %vm829, %v813, %v814
        %v845 = vsel %vm829, %v828, %v813
        %vm846 = vcmp.ge.s32.totalorder %v603, 14
        %vm847 = vcmp.ge.s32.totalorder %v604, 14
        %vm848 = vcmp.ge.s32.totalorder %v605, 14
        %vm849 = vcmp.ge.s32.totalorder %v606, 14
        %vm850 = vcmp.ge.s32.totalorder %v607, 14
        %vm851 = vcmp.ge.s32.totalorder %v608, 14
        %vm852 = vcmp.ge.s32.totalorder %v609, 14
        %vm853 = vcmp.ge.s32.totalorder %v610, 14
        %vm854 = vcmp.ge.s32.totalorder %v611, 14
        %vm855 = vcmp.ge.s32.totalorder %v612, 14
        %vm856 = vcmp.ge.s32.totalorder %v613, 14
        %vm857 = vcmp.ge.s32.totalorder %v614, 14
        %vm858 = vcmp.ge.s32.totalorder %v615, 14
        %vm859 = vcmp.ge.s32.totalorder %v616, 14
        %vm860 = vcmp.ge.s32.totalorder %v617, 14
        %vm861 = vcmp.ge.s32.totalorder %v618, 14
        %v862 = vsel %vm846, 1, 0
        %v863 = vsel %vm847, 1, 0
        %v864 = vsel %vm848, 1, 0
        %v865 = vsel %vm849, 1, 0
        %v866 = vsel %vm850, 1, 0
        %v867 = vsel %vm851, 1, 0
        %v868 = vsel %vm852, 1, 0
        %v869 = vsel %vm853, 1, 0
        %v870 = vsel %vm854, 1, 0
        %v871 = vsel %vm855, 1, 0
        %v872 = vsel %vm856, 1, 0
        %v873 = vsel %vm857, 1, 0
        %v874 = vsel %vm858, 1, 0
        %v875 = vsel %vm859, 1, 0
        %v876 = vsel %vm860, 1, 0
        %v877 = vsel %vm861, 1, 0
        %vm878 = vcmp.eq.s32.totalorder %v862, 1
        %vm879 = vcmp.eq.s32.totalorder %v863, 1
        %vm880 = vcmp.eq.s32.totalorder %v864, 1
        %vm881 = vcmp.eq.s32.totalorder %v865, 1
        %vm882 = vcmp.eq.s32.totalorder %v866, 1
        %vm883 = vcmp.eq.s32.totalorder %v867, 1
        %vm884 = vcmp.eq.s32.totalorder %v868, 1
        %vm885 = vcmp.eq.s32.totalorder %v869, 1
        %vm886 = vcmp.eq.s32.totalorder %v870, 1
        %vm887 = vcmp.eq.s32.totalorder %v871, 1
        %vm888 = vcmp.eq.s32.totalorder %v872, 1
        %vm889 = vcmp.eq.s32.totalorder %v873, 1
        %vm890 = vcmp.eq.s32.totalorder %v874, 1
        %vm891 = vcmp.eq.s32.totalorder %v875, 1
        %vm892 = vcmp.eq.s32.totalorder %v876, 1
        %vm893 = vcmp.eq.s32.totalorder %v877, 1
        %v894 = vsel %vm878, 0.0, %v844
        %v895 = vsel %vm879, 0.0, %v843
        %v896 = vsel %vm880, 0.0, %v842
        %v897 = vsel %vm881, 0.0, %v841
        %v898 = vsel %vm882, 0.0, %v840
        %v899 = vsel %vm883, 0.0, %v839
        %v900 = vsel %vm884, 0.0, %v838
        %v901 = vsel %vm885, 0.0, %v837
        %v902 = vsel %vm886, 0.0, %v836
        %v903 = vsel %vm887, 0.0, %v835
        %v904 = vsel %vm888, 0.0, %v834
        %v905 = vsel %vm889, 0.0, %v833
        %v906 = vsel %vm890, 0.0, %v832
        %v907 = vsel %vm891, 0.0, %v831
        %v908 = vsel %vm892, 0.0, %v830
        %v909 = vsel %vm893, 0.0, %v845
        %926 = vrot.lane.b32.xlu0 %v894, 64
        %v927 = vpop.permute.xlu0 %926
        %928 = vrot.lane.b32.xlu0 %v895, 64
        %v929 = vpop.permute.xlu0 %928
        %930 = vrot.lane.b32.xlu0 %v896, 64
        %v931 = vpop.permute.xlu0 %930
        %932 = vrot.lane.b32.xlu0 %v897, 64
        %v933 = vpop.permute.xlu0 %932
        %934 = vrot.lane.b32.xlu0 %v898, 64
        %v935 = vpop.permute.xlu0 %934
        %936 = vrot.lane.b32.xlu0 %v899, 64
        %v937 = vpop.permute.xlu0 %936
        %938 = vrot.lane.b32.xlu0 %v900, 64
        %v939 = vpop.permute.xlu0 %938
        %940 = vrot.lane.b32.xlu0 %v901, 64
        %v941 = vpop.permute.xlu0 %940
        %942 = vrot.lane.b32.xlu0 %v902, 64
        %v943 = vpop.permute.xlu0 %942
        %944 = vrot.lane.b32.xlu0 %v903, 64
        %v945 = vpop.permute.xlu0 %944
        %946 = vrot.lane.b32.xlu0 %v904, 64
        %v947 = vpop.permute.xlu0 %946
        %948 = vrot.lane.b32.xlu0 %v905, 64
        %v949 = vpop.permute.xlu0 %948
        %950 = vrot.lane.b32.xlu0 %v906, 64
        %v951 = vpop.permute.xlu0 %950
        %952 = vrot.lane.b32.xlu0 %v907, 64
        %v953 = vpop.permute.xlu0 %952
        %954 = vrot.lane.b32.xlu0 %v908, 64
        %v955 = vpop.permute.xlu0 %954
        %956 = vrot.lane.b32.xlu0 %v909, 64
        %v957 = vpop.permute.xlu0 %956
        %vm974 = vcmask 523264
        %v975 = vsel %vm974, %v797, %v927
        %v976 = vsel %vm974, %v798, %v929
        %v977 = vsel %vm974, %v799, %v931
        %v978 = vsel %vm974, %v800, %v933
        %v979 = vsel %vm974, %v801, %v935
        %v980 = vsel %vm974, %v802, %v937
        %v981 = vsel %vm974, %v803, %v939
        %v982 = vsel %vm974, %v804, %v941
        %v983 = vsel %vm974, %v805, %v943
        %v984 = vsel %vm974, %v806, %v945
        %v985 = vsel %vm974, %v807, %v947
        %v986 = vsel %vm974, %v808, %v949
        %v987 = vsel %vm974, %v809, %v951
        %v988 = vsel %vm974, %v810, %v953
        %v989 = vsel %vm974, %v811, %v955
        %v990 = vsel %vm974, %v812, %v957
        %v991 = vld [vmem:[#allocation2] sm:$0xff]
        %v992 = vld [vmem:[#allocation2 + $0x8] sm:$0xff]
        %v993 = vld [vmem:[#allocation2 + $0x10] sm:$0xff]
        %v994 = vld [vmem:[#allocation2 + $0x18] sm:$0xff]
        %v995 = vld [vmem:[#allocation2 + $0x20] sm:$0xff]
        %v996 = vld [vmem:[#allocation2 + $0x28] sm:$0xff]
        %v997 = vld [vmem:[#allocation2 + $0x30] sm:$0xff]
        %v998 = vld [vmem:[#allocation2 + $0x38] sm:$0xff]
        %v999 = vld [vmem:[#allocation2 + $0x40] sm:$0xff]
        %v1000 = vld [vmem:[#allocation2 + $0x48] sm:$0xff]
        %v1001 = vld [vmem:[#allocation2 + $0x50] sm:$0xff]
        %v1002 = vld [vmem:[#allocation2 + $0x58] sm:$0xff]
        %v1003 = vld [vmem:[#allocation2 + $0x60] sm:$0xff]
        %v1004 = vld [vmem:[#allocation2 + $0x68] sm:$0xff]
        %v1005 = vld [vmem:[#allocation2 + $0x70] sm:$0xff]
        %v1006 = vld [vmem:[#allocation2 + $0x78] sm:$0xff]
        %v1007 = vld [vmem:[%s4] sm:$0x1]
        %v1009 = vperm.slane %v1007, 0
        %1011 = vmatpush.msra.mxu0 %v1006
        %1012 = vmatpush.msra.mxu0 %v1005
        %1013 = vmatpush.msra.mxu0 %v1004
        %1014 = vmatpush.msra.mxu0 %v1003
        %1015 = vmatpush.msra.mxu0 %v1002
        %1016 = vmatpush.msra.mxu0 %v1001
        %1017 = vmatpush.msra.mxu0 %v1000
        %1018 = vmatpush.msra.mxu0 %v999
        %1019 = vmatpush.msra.mxu0 %v998
        %1020 = vmatpush.msra.mxu0 %v997
        %1021 = vmatpush.msra.mxu0 %v996
        %1022 = vmatpush.msra.mxu0 %v995
        %1023 = vmatpush.msra.mxu0 %v994
        %1024 = vmatpush.msra.mxu0 %v993
        %1025 = vmatpush.msra.mxu0 %v992
        %1026 = vmatpush.msra.mxu0 %v991
        %1027 = vmatmul.f32.gmra.mxu0 %v975
        %v1028 = vpop.f32.mrf.mxu0
        %v1029 = vadd.f32 %v1009, %v1028
        %1030 = vmatmul.f32.gmra.mxu0 %v976
        %v1031 = vpop.f32.mrf.mxu0
        %v1032 = vadd.f32 %v1009, %v1031
        %1033 = vmatmul.f32.gmra.mxu0 %v977
        %v1034 = vpop.f32.mrf.mxu0
        %v1035 = vadd.f32 %v1009, %v1034
        %1036 = vmatmul.f32.gmra.mxu0 %v978
        %v1037 = vpop.f32.mrf.mxu0
        %v1038 = vadd.f32 %v1009, %v1037
        %1039 = vmatmul.f32.gmra.mxu0 %v979
        %v1040 = vpop.f32.mrf.mxu0
        %v1041 = vadd.f32 %v1009, %v1040
        %1042 = vmatmul.f32.gmra.mxu0 %v980
        %v1043 = vpop.f32.mrf.mxu0
        %v1044 = vadd.f32 %v1009, %v1043
        %1045 = vmatmul.f32.gmra.mxu0 %v981
        %v1046 = vpop.f32.mrf.mxu0
        %v1047 = vadd.f32 %v1009, %v1046
        %1048 = vmatmul.f32.gmra.mxu0 %v982
        %v1049 = vpop.f32.mrf.mxu0
        %v1050 = vadd.f32 %v1009, %v1049
        %1051 = vmatmul.f32.gmra.mxu0 %v983
        %v1052 = vpop.f32.mrf.mxu0
        %v1053 = vadd.f32 %v1009, %v1052
        %1054 = vmatmul.f32.gmra.mxu0 %v984
        %v1055 = vpop.f32.mrf.mxu0
        %v1056 = vadd.f32 %v1009, %v1055
        %1057 = vmatmul.f32.gmra.mxu0 %v985
        %v1058 = vpop.f32.mrf.mxu0
        %v1059 = vadd.f32 %v1009, %v1058
        %1060 = vmatmul.f32.gmra.mxu0 %v986
        %v1061 = vpop.f32.mrf.mxu0
        %v1062 = vadd.f32 %v1009, %v1061
        %1063 = vmatmul.f32.gmra.mxu0 %v987
        %v1064 = vpop.f32.mrf.mxu0
        %v1065 = vadd.f32 %v1009, %v1064
        %1066 = vmatmul.f32.gmra.mxu0 %v988
        %v1067 = vpop.f32.mrf.mxu0
        %v1068 = vadd.f32 %v1009, %v1067
        %1069 = vmatmul.f32.gmra.mxu0 %v989
        %v1070 = vpop.f32.mrf.mxu0
        %v1071 = vadd.f32 %v1009, %v1070
        %1072 = vmatmul.f32.gmra.mxu0 %v990
        %v1073 = vpop.f32.mrf.mxu0
        %v1074 = vadd.f32 %v1009, %v1073
        %1075 = vdwg.mxu0
        %v1076 = vmax.f32 %v1029, 0.0
        %v1077 = vmax.f32 %v1032, 0.0
        %v1078 = vmax.f32 %v1035, 0.0
        %v1079 = vmax.f32 %v1038, 0.0
        %v1080 = vmax.f32 %v1041, 0.0
        %v1081 = vmax.f32 %v1044, 0.0
        %v1082 = vmax.f32 %v1047, 0.0
        %v1083 = vmax.f32 %v1050, 0.0
        %v1084 = vmax.f32 %v1053, 0.0
        %v1085 = vmax.f32 %v1056, 0.0
        %v1086 = vmax.f32 %v1059, 0.0
        %v1087 = vmax.f32 %v1062, 0.0
        %v1088 = vmax.f32 %v1065, 0.0
        %v1089 = vmax.f32 %v1068, 0.0
        %v1090 = vmax.f32 %v1071, 0.0
        %v1091 = vmax.f32 %v1074, 0.0
        %v1092 = vrot.slane %v1076, 2
        %v1093 = vrot.slane %v1077, 2
        %v1094 = vrot.slane %v1078, 2
        %v1095 = vrot.slane %v1079, 2
        %v1096 = vrot.slane %v1080, 2
        %v1097 = vrot.slane %v1081, 2
        %v1098 = vrot.slane %v1082, 2
        %v1099 = vrot.slane %v1083, 2
        %v1100 = vrot.slane %v1084, 2
        %v1101 = vrot.slane %v1085, 2
        %v1102 = vrot.slane %v1086, 2
        %v1103 = vrot.slane %v1087, 2
        %v1104 = vrot.slane %v1088, 2
        %v1105 = vrot.slane %v1089, 2
        %v1106 = vrot.slane %v1090, 2
        %v1107 = vrot.slane %v1091, 2
        %v1108 = vsel %vm829, %v1106, %v1107
        %v1109 = vsel %vm829, %v1105, %v1106
        %v1110 = vsel %vm829, %v1104, %v1105
        %v1111 = vsel %vm829, %v1103, %v1104
        %v1112 = vsel %vm829, %v1102, %v1103
        %v1113 = vsel %vm829, %v1101, %v1102
        %v1114 = vsel %vm829, %v1100, %v1101
        %v1115 = vsel %vm829, %v1099, %v1100
        %v1116 = vsel %vm829, %v1098, %v1099
        %v1117 = vsel %vm829, %v1097, %v1098
        %v1118 = vsel %vm829, %v1096, %v1097
        %v1119 = vsel %vm829, %v1095, %v1096
        %v1120 = vsel %vm829, %v1094, %v1095
        %v1121 = vsel %vm829, %v1093, %v1094
        %v1122 = vsel %vm829, %v1092, %v1093
        %v1123 = vsel %vm829, %v1107, %v1092
        %v1124 = vmax.f32 %v1076, %v1122
        %v1125 = vmax.f32 %v1077, %v1121
        %v1126 = vmax.f32 %v1078, %v1120
        %v1127 = vmax.f32 %v1079, %v1119
        %v1128 = vmax.f32 %v1080, %v1118
        %v1129 = vmax.f32 %v1081, %v1117
        %v1130 = vmax.f32 %v1082, %v1116
        %v1131 = vmax.f32 %v1083, %v1115
        %v1132 = vmax.f32 %v1084, %v1114
        %v1133 = vmax.f32 %v1085, %v1113
        %v1134 = vmax.f32 %v1086, %v1112
        %v1135 = vmax.f32 %v1087, %v1111
        %v1136 = vmax.f32 %v1088, %v1110
        %v1137 = vmax.f32 %v1089, %v1109
        %v1138 = vmax.f32 %v1090, %v1108
        %v1139 = vmax.f32 %v1091, %v1123
        %v1140 = vrot.slane %v1124, 4
        %v1141 = vrot.slane %v1125, 4
        %v1142 = vrot.slane %v1126, 4
        %v1143 = vrot.slane %v1127, 4
        %v1144 = vrot.slane %v1128, 4
        %v1145 = vrot.slane %v1129, 4
        %v1146 = vrot.slane %v1130, 4
        %v1147 = vrot.slane %v1131, 4
        %v1148 = vrot.slane %v1132, 4
        %v1149 = vrot.slane %v1133, 4
        %v1150 = vrot.slane %v1134, 4
        %v1151 = vrot.slane %v1135, 4
        %v1152 = vrot.slane %v1136, 4
        %v1153 = vrot.slane %v1137, 4
        %v1154 = vrot.slane %v1138, 4
        %v1155 = vrot.slane %v1139, 4
        %vm1156 = vcmp.lt.s32.totalorder %v411, 4
        %v1157 = vsel %vm1156, %v1154, %v1155
        %v1158 = vsel %vm1156, %v1153, %v1154
        %v1159 = vsel %vm1156, %v1152, %v1153
        %v1160 = vsel %vm1156, %v1151, %v1152
        %v1161 = vsel %vm1156, %v1150, %v1151
        %v1162 = vsel %vm1156, %v1149, %v1150
        %v1163 = vsel %vm1156, %v1148, %v1149
        %v1164 = vsel %vm1156, %v1147, %v1148
        %v1165 = vsel %vm1156, %v1146, %v1147
        %v1166 = vsel %vm1156, %v1145, %v1146
        %v1167 = vsel %vm1156, %v1144, %v1145
        %v1168 = vsel %vm1156, %v1143, %v1144
        %v1169 = vsel %vm1156, %v1142, %v1143
        %v1170 = vsel %vm1156, %v1141, %v1142
        %v1171 = vsel %vm1156, %v1140, %v1141
        %v1172 = vsel %vm1156, %v1155, %v1140
        %vm1173 = vcmp.ge.s32.totalorder %v603, 12
        %vm1174 = vcmp.ge.s32.totalorder %v604, 12
        %vm1175 = vcmp.ge.s32.totalorder %v605, 12
        %vm1176 = vcmp.ge.s32.totalorder %v606, 12
        %vm1177 = vcmp.ge.s32.totalorder %v607, 12
        %vm1178 = vcmp.ge.s32.totalorder %v608, 12
        %vm1179 = vcmp.ge.s32.totalorder %v609, 12
        %vm1180 = vcmp.ge.s32.totalorder %v610, 12
        %vm1181 = vcmp.ge.s32.totalorder %v611, 12
        %vm1182 = vcmp.ge.s32.totalorder %v612, 12
        %vm1183 = vcmp.ge.s32.totalorder %v613, 12
        %vm1184 = vcmp.ge.s32.totalorder %v614, 12
        %vm1185 = vcmp.ge.s32.totalorder %v615, 12
        %vm1186 = vcmp.ge.s32.totalorder %v616, 12
        %vm1187 = vcmp.ge.s32.totalorder %v617, 12
        %vm1188 = vcmp.ge.s32.totalorder %v618, 12
        %v1189 = vsel %vm1173, 1, 0
        %v1190 = vsel %vm1174, 1, 0
        %v1191 = vsel %vm1175, 1, 0
        %v1192 = vsel %vm1176, 1, 0
        %v1193 = vsel %vm1177, 1, 0
        %v1194 = vsel %vm1178, 1, 0
        %v1195 = vsel %vm1179, 1, 0
        %v1196 = vsel %vm1180, 1, 0
        %v1197 = vsel %vm1181, 1, 0
        %v1198 = vsel %vm1182, 1, 0
        %v1199 = vsel %vm1183, 1, 0
        %v1200 = vsel %vm1184, 1, 0
        %v1201 = vsel %vm1185, 1, 0
        %v1202 = vsel %vm1186, 1, 0
        %v1203 = vsel %vm1187, 1, 0
        %v1204 = vsel %vm1188, 1, 0
        %vm1205 = vcmp.eq.s32.totalorder %v1189, 1
        %vm1206 = vcmp.eq.s32.totalorder %v1190, 1
        %vm1207 = vcmp.eq.s32.totalorder %v1191, 1
        %vm1208 = vcmp.eq.s32.totalorder %v1192, 1
        %vm1209 = vcmp.eq.s32.totalorder %v1193, 1
        %vm1210 = vcmp.eq.s32.totalorder %v1194, 1
        %vm1211 = vcmp.eq.s32.totalorder %v1195, 1
        %vm1212 = vcmp.eq.s32.totalorder %v1196, 1
        %vm1213 = vcmp.eq.s32.totalorder %v1197, 1
        %vm1214 = vcmp.eq.s32.totalorder %v1198, 1
        %vm1215 = vcmp.eq.s32.totalorder %v1199, 1
        %vm1216 = vcmp.eq.s32.totalorder %v1200, 1
        %vm1217 = vcmp.eq.s32.totalorder %v1201, 1
        %vm1218 = vcmp.eq.s32.totalorder %v1202, 1
        %vm1219 = vcmp.eq.s32.totalorder %v1203, 1
        %vm1220 = vcmp.eq.s32.totalorder %v1204, 1
        %v1221 = vsel %vm1205, 0.0, %v1171
        %v1222 = vsel %vm1206, 0.0, %v1170
        %v1223 = vsel %vm1207, 0.0, %v1169
        %v1224 = vsel %vm1208, 0.0, %v1168
        %v1225 = vsel %vm1209, 0.0, %v1167
        %v1226 = vsel %vm1210, 0.0, %v1166
        %v1227 = vsel %vm1211, 0.0, %v1165
        %v1228 = vsel %vm1212, 0.0, %v1164
        %v1229 = vsel %vm1213, 0.0, %v1163
        %v1230 = vsel %vm1214, 0.0, %v1162
        %v1231 = vsel %vm1215, 0.0, %v1161
        %v1232 = vsel %vm1216, 0.0, %v1160
        %v1233 = vsel %vm1217, 0.0, %v1159
        %v1234 = vsel %vm1218, 0.0, %v1158
        %v1235 = vsel %vm1219, 0.0, %v1157
        %v1236 = vsel %vm1220, 0.0, %v1172
        %v1237 = vld [vmem:[#allocation5] sm:$0xff]
        %v1238 = vld [vmem:[#allocation5 + $0x8] sm:$0xff]
        %v1239 = vld [vmem:[#allocation5 + $0x10] sm:$0xff]
        %v1240 = vld [vmem:[#allocation5 + $0x18] sm:$0xff]
        %v1241 = vld [vmem:[#allocation5 + $0x20] sm:$0xff]
        %v1242 = vld [vmem:[#allocation5 + $0x28] sm:$0xff]
        %v1243 = vld [vmem:[#allocation5 + $0x30] sm:$0xff]
        %v1244 = vld [vmem:[#allocation5 + $0x38] sm:$0xff]
        %v1245 = vld [vmem:[#allocation5 + $0x40] sm:$0xff]
        %v1246 = vld [vmem:[#allocation5 + $0x48] sm:$0xff]
        %v1247 = vld [vmem:[#allocation5 + $0x50] sm:$0xff]
        %v1248 = vld [vmem:[#allocation5 + $0x58] sm:$0xff]
        %v1249 = vld [vmem:[#allocation5 + $0x60] sm:$0xff]
        %v1250 = vld [vmem:[#allocation5 + $0x68] sm:$0xff]
        %v1251 = vld [vmem:[#allocation5 + $0x70] sm:$0xff]
        %v1252 = vld [vmem:[#allocation5 + $0x78] sm:$0xff]
        %v1253 = vld [vmem:[#allocation5 + $0x80] sm:$0xff]
        %v1254 = vld [vmem:[#allocation5 + $0x88] sm:$0xff]
        %v1255 = vld [vmem:[#allocation5 + $0x90] sm:$0xff]
        %v1256 = vld [vmem:[#allocation5 + $0x98] sm:$0xff]
        %v1257 = vld [vmem:[#allocation5 + $0xa0] sm:$0xff]
        %v1258 = vld [vmem:[#allocation5 + $0xa8] sm:$0xff]
        %v1259 = vld [vmem:[#allocation5 + $0xb0] sm:$0xff]
        %v1260 = vld [vmem:[#allocation5 + $0xb8] sm:$0xff]
        %v1261 = vld [vmem:[#allocation5 + $0xc0] sm:$0xff]
        %v1262 = vld [vmem:[#allocation5 + $0xc8] sm:$0xff]
        %v1263 = vld [vmem:[#allocation5 + $0xd0] sm:$0xff]
        %v1264 = vld [vmem:[#allocation5 + $0xd8] sm:$0xff]
        %v1265 = vld [vmem:[#allocation5 + $0xe0] sm:$0xff]
        %v1266 = vld [vmem:[#allocation5 + $0xe8] sm:$0xff]
        %v1267 = vld [vmem:[#allocation5 + $0xf0] sm:$0xff]
        %v1268 = vld [vmem:[#allocation5 + $0xf8] sm:$0xff]
        %v1269 = vld [vmem:[#allocation5 + $0x100] sm:$0xff]
        %v1270 = vld [vmem:[#allocation5 + $0x108] sm:$0xff]
        %v1271 = vld [vmem:[#allocation5 + $0x110] sm:$0xff]
        %v1272 = vld [vmem:[#allocation5 + $0x118] sm:$0xff]
        %v1273 = vld [vmem:[#allocation5 + $0x120] sm:$0xff]
        %v1274 = vld [vmem:[#allocation5 + $0x128] sm:$0xff]
        %v1275 = vld [vmem:[#allocation5 + $0x130] sm:$0xff]
        %v1276 = vld [vmem:[#allocation5 + $0x138] sm:$0xff]
        %v1277 = vld [vmem:[#allocation5 + $0x140] sm:$0xff]
        %v1278 = vld [vmem:[#allocation5 + $0x148] sm:$0xff]
        %v1279 = vld [vmem:[#allocation5 + $0x150] sm:$0xff]
        %v1280 = vld [vmem:[#allocation5 + $0x158] sm:$0xff]
        %v1281 = vld [vmem:[#allocation5 + $0x160] sm:$0xff]
        %v1282 = vld [vmem:[#allocation5 + $0x168] sm:$0xff]
        %v1283 = vld [vmem:[#allocation5 + $0x170] sm:$0xff]
        %v1284 = vld [vmem:[#allocation5 + $0x178] sm:$0xff]
        %v1285 = vld [vmem:[#allocation5 + $0x180] sm:$0xff]
        %v1286 = vld [vmem:[#allocation5 + $0x188] sm:$0xff]
        %v1287 = vld [vmem:[#allocation5 + $0x190] sm:$0xff]
        %v1288 = vld [vmem:[#allocation5 + $0x198] sm:$0xff]
        %v1289 = vld [vmem:[#allocation5 + $0x1a0] sm:$0xff]
        %v1290 = vld [vmem:[#allocation5 + $0x1a8] sm:$0xff]
        %v1291 = vld [vmem:[#allocation5 + $0x1b0] sm:$0xff]
        %v1292 = vld [vmem:[#allocation5 + $0x1b8] sm:$0xff]
        %v1293 = vld [vmem:[#allocation5 + $0x1c0] sm:$0xff]
        %v1294 = vld [vmem:[#allocation5 + $0x1c8] sm:$0xff]
        %v1295 = vld [vmem:[#allocation5 + $0x1d0] sm:$0xff]
        %v1296 = vld [vmem:[#allocation5 + $0x1d8] sm:$0xff]
        %v1297 = vld [vmem:[#allocation5 + $0x1e0] sm:$0xff]
        %v1298 = vld [vmem:[#allocation5 + $0x1e8] sm:$0xff]
        %v1299 = vld [vmem:[#allocation5 + $0x1f0] sm:$0xff]
        %v1300 = vld [vmem:[#allocation5 + $0x1f8] sm:$0xff]
        %v1301 = vld [vmem:[%s6] sm:$0x3]
        %v1303 = vperm.slane %v1301, 0
        %v1304 = vperm.slane %v1301, 1
        %1307 = vmatpush.msra.mxu0 %v1267
        %1308 = vmatpush.msra.mxu0 %v1265
        %1309 = vmatpush.msra.mxu0 %v1263
        %1310 = vmatpush.msra.mxu0 %v1261
        %1311 = vmatpush.msra.mxu0 %v1259
        %1312 = vmatpush.msra.mxu0 %v1257
        %1313 = vmatpush.msra.mxu0 %v1255
        %1314 = vmatpush.msra.mxu0 %v1253
        %1315 = vmatpush.msra.mxu0 %v1251
        %1316 = vmatpush.msra.mxu0 %v1249
        %1317 = vmatpush.msra.mxu0 %v1247
        %1318 = vmatpush.msra.mxu0 %v1245
        %1319 = vmatpush.msra.mxu0 %v1243
        %1320 = vmatpush.msra.mxu0 %v1241
        %1321 = vmatpush.msra.mxu0 %v1239
        %1322 = vmatpush.msra.mxu0 %v1237
        %1323 = vmatmul.f32.gmra.mxu0 %v1124
        %v1324 = vpop.f32.mrf.mxu0
        %v1325 = vadd.f32 %v1303, %v1324
        %1326 = vmatmul.f32.gmra.mxu0 %v1125
        %v1327 = vpop.f32.mrf.mxu0
        %v1328 = vadd.f32 %v1303, %v1327
        %1329 = vmatmul.f32.gmra.mxu0 %v1126
        %v1330 = vpop.f32.mrf.mxu0
        %v1331 = vadd.f32 %v1303, %v1330
        %1332 = vmatmul.f32.gmra.mxu0 %v1127
        %v1333 = vpop.f32.mrf.mxu0
        %v1334 = vadd.f32 %v1303, %v1333
        %1335 = vmatmul.f32.gmra.mxu0 %v1128
        %v1336 = vpop.f32.mrf.mxu0
        %v1337 = vadd.f32 %v1303, %v1336
        %1338 = vmatmul.f32.gmra.mxu0 %v1129
        %v1339 = vpop.f32.mrf.mxu0
        %v1340 = vadd.f32 %v1303, %v1339
        %1341 = vmatmul.f32.gmra.mxu0 %v1130
        %v1342 = vpop.f32.mrf.mxu0
        %v1343 = vadd.f32 %v1303, %v1342
        %1344 = vmatmul.f32.gmra.mxu0 %v1131
        %v1345 = vpop.f32.mrf.mxu0
        %v1346 = vadd.f32 %v1303, %v1345
        %1347 = vmatmul.f32.gmra.mxu0 %v1132
        %v1348 = vpop.f32.mrf.mxu0
        %v1349 = vadd.f32 %v1303, %v1348
        %1350 = vmatmul.f32.gmra.mxu0 %v1133
        %v1351 = vpop.f32.mrf.mxu0
        %v1352 = vadd.f32 %v1303, %v1351
        %1353 = vmatmul.f32.gmra.mxu0 %v1134
        %v1354 = vpop.f32.mrf.mxu0
        %v1355 = vadd.f32 %v1303, %v1354
        %1356 = vmatmul.f32.gmra.mxu0 %v1135
        %v1357 = vpop.f32.mrf.mxu0
        %v1358 = vadd.f32 %v1303, %v1357
        %1359 = vmatmul.f32.gmra.mxu0 %v1136
        %v1360 = vpop.f32.mrf.mxu0
        %v1361 = vadd.f32 %v1303, %v1360
        %1362 = vmatmul.f32.gmra.mxu0 %v1137
        %v1363 = vpop.f32.mrf.mxu0
        %v1364 = vadd.f32 %v1303, %v1363
        %1365 = vmatmul.f32.gmra.mxu0 %v1138
        %v1366 = vpop.f32.mrf.mxu0
        %v1367 = vadd.f32 %v1303, %v1366
        %1368 = vmatmul.f32.gmra.mxu0 %v1139
        %v1369 = vpop.f32.mrf.mxu0
        %v1370 = vadd.f32 %v1303, %v1369
        %1371 = vdwg.mxu0
        %1372 = vmatpush.msra.mxu0 %v1299
        %1373 = vmatpush.msra.mxu0 %v1297
        %1374 = vmatpush.msra.mxu0 %v1295
        %1375 = vmatpush.msra.mxu0 %v1293
        %1376 = vmatpush.msra.mxu0 %v1291
        %1377 = vmatpush.msra.mxu0 %v1289
        %1378 = vmatpush.msra.mxu0 %v1287
        %1379 = vmatpush.msra.mxu0 %v1285
        %1380 = vmatpush.msra.mxu0 %v1283
        %1381 = vmatpush.msra.mxu0 %v1281
        %1382 = vmatpush.msra.mxu0 %v1279
        %1383 = vmatpush.msra.mxu0 %v1277
        %1384 = vmatpush.msra.mxu0 %v1275
        %1385 = vmatpush.msra.mxu0 %v1273
        %1386 = vmatpush.msra.mxu0 %v1271
        %1387 = vmatpush.msra.mxu0 %v1269
        %1388 = vmatmul.f32.gmra.mxu0 %v1221
        %v1389 = vpop.f32.mrf.mxu0
        %v1390 = vadd.f32 %v1325, %v1389
        %1391 = vmatmul.f32.gmra.mxu0 %v1222
        %v1392 = vpop.f32.mrf.mxu0
        %v1393 = vadd.f32 %v1328, %v1392
        %1394 = vmatmul.f32.gmra.mxu0 %v1223
        %v1395 = vpop.f32.mrf.mxu0
        %v1396 = vadd.f32 %v1331, %v1395
        %1397 = vmatmul.f32.gmra.mxu0 %v1224
        %v1398 = vpop.f32.mrf.mxu0
        %v1399 = vadd.f32 %v1334, %v1398
        %1400 = vmatmul.f32.gmra.mxu0 %v1225
        %v1401 = vpop.f32.mrf.mxu0
        %v1402 = vadd.f32 %v1337, %v1401
        %1403 = vmatmul.f32.gmra.mxu0 %v1226
        %v1404 = vpop.f32.mrf.mxu0
        %v1405 = vadd.f32 %v1340, %v1404
        %1406 = vmatmul.f32.gmra.mxu0 %v1227
        %v1407 = vpop.f32.mrf.mxu0
        %v1408 = vadd.f32 %v1343, %v1407
        %1409 = vmatmul.f32.gmra.mxu0 %v1228
        %v1410 = vpop.f32.mrf.mxu0
        %v1411 = vadd.f32 %v1346, %v1410
        %1412 = vmatmul.f32.gmra.mxu0 %v1229
        %v1413 = vpop.f32.mrf.mxu0
        %v1414 = vadd.f32 %v1349, %v1413
        %1415 = vmatmul.f32.gmra.mxu0 %v1230
        %v1416 = vpop.f32.mrf.mxu0
        %v1417 = vadd.f32 %v1352, %v1416
        %1418 = vmatmul.f32.gmra.mxu0 %v1231
        %v1419 = vpop.f32.mrf.mxu0
        %v1420 = vadd.f32 %v1355, %v1419
        %1421 = vmatmul.f32.gmra.mxu0 %v1232
        %v1422 = vpop.f32.mrf.mxu0
        %v1423 = vadd.f32 %v1358, %v1422
        %1424 = vmatmul.f32.gmra.mxu0 %v1233
        %v1425 = vpop.f32.mrf.mxu0
        %v1426 = vadd.f32 %v1361, %v1425
        %1427 = vmatmul.f32.gmra.mxu0 %v1234
        %v1428 = vpop.f32.mrf.mxu0
        %v1429 = vadd.f32 %v1364, %v1428
        %1430 = vmatmul.f32.gmra.mxu0 %v1235
        %v1431 = vpop.f32.mrf.mxu0
        %v1432 = vadd.f32 %v1367, %v1431
        %1433 = vmatmul.f32.gmra.mxu0 %v1236
        %v1434 = vpop.f32.mrf.mxu0
        %v1435 = vadd.f32 %v1370, %v1434
        %1436 = vdwg.mxu0
        %1437 = vmatpush.msra.mxu0 %v1268
        %1438 = vmatpush.msra.mxu0 %v1266
        %1439 = vmatpush.msra.mxu0 %v1264
        %1440 = vmatpush.msra.mxu0 %v1262
        %1441 = vmatpush.msra.mxu0 %v1260
        %1442 = vmatpush.msra.mxu0 %v1258
        %1443 = vmatpush.msra.mxu0 %v1256
        %1444 = vmatpush.msra.mxu0 %v1254
        %1445 = vmatpush.msra.mxu0 %v1252
        %1446 = vmatpush.msra.mxu0 %v1250
        %1447 = vmatpush.msra.mxu0 %v1248
        %1448 = vmatpush.msra.mxu0 %v1246
        %1449 = vmatpush.msra.mxu0 %v1244
        %1450 = vmatpush.msra.mxu0 %v1242
        %1451 = vmatpush.msra.mxu0 %v1240
        %1452 = vmatpush.msra.mxu0 %v1238
        %1453 = vmatmul.f32.gmra.mxu0 %v1124
        %v1454 = vpop.f32.mrf.mxu0
        %v1455 = vadd.f32 %v1304, %v1454
        %1456 = vmatmul.f32.gmra.mxu0 %v1125
        %v1457 = vpop.f32.mrf.mxu0
        %v1458 = vadd.f32 %v1304, %v1457
        %1459 = vmatmul.f32.gmra.mxu0 %v1126
        %v1460 = vpop.f32.mrf.mxu0
        %v1461 = vadd.f32 %v1304, %v1460
        %1462 = vmatmul.f32.gmra.mxu0 %v1127
        %v1463 = vpop.f32.mrf.mxu0
        %v1464 = vadd.f32 %v1304, %v1463
        %1465 = vmatmul.f32.gmra.mxu0 %v1128
        %v1466 = vpop.f32.mrf.mxu0
        %v1467 = vadd.f32 %v1304, %v1466
        %1468 = vmatmul.f32.gmra.mxu0 %v1129
        %v1469 = vpop.f32.mrf.mxu0
        %v1470 = vadd.f32 %v1304, %v1469
        %1471 = vmatmul.f32.gmra.mxu0 %v1130
        %v1472 = vpop.f32.mrf.mxu0
        %v1473 = vadd.f32 %v1304, %v1472
        %1474 = vmatmul.f32.gmra.mxu0 %v1131
        %v1475 = vpop.f32.mrf.mxu0
        %v1476 = vadd.f32 %v1304, %v1475
        %1477 = vmatmul.f32.gmra.mxu0 %v1132
        %v1478 = vpop.f32.mrf.mxu0
        %v1479 = vadd.f32 %v1304, %v1478
        %1480 = vmatmul.f32.gmra.mxu0 %v1133
        %v1481 = vpop.f32.mrf.mxu0
        %v1482 = vadd.f32 %v1304, %v1481
        %1483 = vmatmul.f32.gmra.mxu0 %v1134
        %v1484 = vpop.f32.mrf.mxu0
        %v1485 = vadd.f32 %v1304, %v1484
        %1486 = vmatmul.f32.gmra.mxu0 %v1135
        %v1487 = vpop.f32.mrf.mxu0
        %v1488 = vadd.f32 %v1304, %v1487
        %1489 = vmatmul.f32.gmra.mxu0 %v1136
        %v1490 = vpop.f32.mrf.mxu0
        %v1491 = vadd.f32 %v1304, %v1490
        %1492 = vmatmul.f32.gmra.mxu0 %v1137
        %v1493 = vpop.f32.mrf.mxu0
        %v1494 = vadd.f32 %v1304, %v1493
        %1495 = vmatmul.f32.gmra.mxu0 %v1138
        %v1496 = vpop.f32.mrf.mxu0
        %v1497 = vadd.f32 %v1304, %v1496
        %1498 = vmatmul.f32.gmra.mxu0 %v1139
        %v1499 = vpop.f32.mrf.mxu0
        %v1500 = vadd.f32 %v1304, %v1499
        %1501 = vdwg.mxu0
        %1502 = vmatpush.msra.mxu0 %v1300
        %1503 = vmatpush.msra.mxu0 %v1298
        %1504 = vmatpush.msra.mxu0 %v1296
        %1505 = vmatpush.msra.mxu0 %v1294
        %1506 = vmatpush.msra.mxu0 %v1292
        %1507 = vmatpush.msra.mxu0 %v1290
        %1508 = vmatpush.msra.mxu0 %v1288
        %1509 = vmatpush.msra.mxu0 %v1286
        %1510 = vmatpush.msra.mxu0 %v1284
        %1511 = vmatpush.msra.mxu0 %v1282
        %1512 = vmatpush.msra.mxu0 %v1280
        %1513 = vmatpush.msra.mxu0 %v1278
        %1514 = vmatpush.msra.mxu0 %v1276
        %1515 = vmatpush.msra.mxu0 %v1274
        %1516 = vmatpush.msra.mxu0 %v1272
        %1517 = vmatpush.msra.mxu0 %v1270
        %1518 = vmatmul.f32.gmra.mxu0 %v1221
        %v1519 = vpop.f32.mrf.mxu0
        %v1520 = vadd.f32 %v1455, %v1519
        %1521 = vmatmul.f32.gmra.mxu0 %v1222
        %v1522 = vpop.f32.mrf.mxu0
        %v1523 = vadd.f32 %v1458, %v1522
        %1524 = vmatmul.f32.gmra.mxu0 %v1223
        %v1525 = vpop.f32.mrf.mxu0
        %v1526 = vadd.f32 %v1461, %v1525
        %1527 = vmatmul.f32.gmra.mxu0 %v1224
        %v1528 = vpop.f32.mrf.mxu0
        %v1529 = vadd.f32 %v1464, %v1528
        %1530 = vmatmul.f32.gmra.mxu0 %v1225
        %v1531 = vpop.f32.mrf.mxu0
        %v1532 = vadd.f32 %v1467, %v1531
        %1533 = vmatmul.f32.gmra.mxu0 %v1226
        %v1534 = vpop.f32.mrf.mxu0
        %v1535 = vadd.f32 %v1470, %v1534
        %1536 = vmatmul.f32.gmra.mxu0 %v1227
        %v1537 = vpop.f32.mrf.mxu0
        %v1538 = vadd.f32 %v1473, %v1537
        %1539 = vmatmul.f32.gmra.mxu0 %v1228
        %v1540 = vpop.f32.mrf.mxu0
        %v1541 = vadd.f32 %v1476, %v1540
        %1542 = vmatmul.f32.gmra.mxu0 %v1229
        %v1543 = vpop.f32.mrf.mxu0
        %v1544 = vadd.f32 %v1479, %v1543
        %1545 = vmatmul.f32.gmra.mxu0 %v1230
        %v1546 = vpop.f32.mrf.mxu0
        %v1547 = vadd.f32 %v1482, %v1546
        %1548 = vmatmul.f32.gmra.mxu0 %v1231
        %v1549 = vpop.f32.mrf.mxu0
        %v1550 = vadd.f32 %v1485, %v1549
        %1551 = vmatmul.f32.gmra.mxu0 %v1232
        %v1552 = vpop.f32.mrf.mxu0
        %v1553 = vadd.f32 %v1488, %v1552
        %1554 = vmatmul.f32.gmra.mxu0 %v1233
        %v1555 = vpop.f32.mrf.mxu0
        %v1556 = vadd.f32 %v1491, %v1555
        %1557 = vmatmul.f32.gmra.mxu0 %v1234
        %v1558 = vpop.f32.mrf.mxu0
        %v1559 = vadd.f32 %v1494, %v1558
        %1560 = vmatmul.f32.gmra.mxu0 %v1235
        %v1561 = vpop.f32.mrf.mxu0
        %v1562 = vadd.f32 %v1497, %v1561
        %1563 = vmatmul.f32.gmra.mxu0 %v1236
        %v1564 = vpop.f32.mrf.mxu0
        %v1565 = vadd.f32 %v1500, %v1564
        %1566 = vdwg.mxu0
        %v1567 = vmax.f32 %v1390, 0.0
        %v1568 = vmax.f32 %v1520, 0.0
        %v1569 = vmax.f32 %v1393, 0.0
        %v1570 = vmax.f32 %v1523, 0.0
        %v1571 = vmax.f32 %v1396, 0.0
        %v1572 = vmax.f32 %v1526, 0.0
        %v1573 = vmax.f32 %v1399, 0.0
        %v1574 = vmax.f32 %v1529, 0.0
        %v1575 = vmax.f32 %v1402, 0.0
        %v1576 = vmax.f32 %v1532, 0.0
        %v1577 = vmax.f32 %v1405, 0.0
        %v1578 = vmax.f32 %v1535, 0.0
        %v1579 = vmax.f32 %v1408, 0.0
        %v1580 = vmax.f32 %v1538, 0.0
        %v1581 = vmax.f32 %v1411, 0.0
        %v1582 = vmax.f32 %v1541, 0.0
        %v1583 = vmax.f32 %v1414, 0.0
        %v1584 = vmax.f32 %v1544, 0.0
        %v1585 = vmax.f32 %v1417, 0.0
        %v1586 = vmax.f32 %v1547, 0.0
        %v1587 = vmax.f32 %v1420, 0.0
        %v1588 = vmax.f32 %v1550, 0.0
        %v1589 = vmax.f32 %v1423, 0.0
        %v1590 = vmax.f32 %v1553, 0.0
        %v1591 = vmax.f32 %v1426, 0.0
        %v1592 = vmax.f32 %v1556, 0.0
        %v1593 = vmax.f32 %v1429, 0.0
        %v1594 = vmax.f32 %v1559, 0.0
        %v1595 = vmax.f32 %v1432, 0.0
        %v1596 = vmax.f32 %v1562, 0.0
        %v1597 = vmax.f32 %v1435, 0.0
        %v1598 = vmax.f32 %v1565, 0.0
        %v1599 = vld [vmem:[%s7] sm:$0xff]
        %1600 = vmatpush.msra.mxu0 %v1597
        %1601 = vmatpush.msra.mxu0 %v1595
        %1602 = vmatpush.msra.mxu0 %v1593
        %1603 = vmatpush.msra.mxu0 %v1591
        %1604 = vmatpush.msra.mxu0 %v1589
        %1605 = vmatpush.msra.mxu0 %v1587
        %1606 = vmatpush.msra.mxu0 %v1585
        %1607 = vmatpush.msra.mxu0 %v1583
        %1608 = vmatpush.msra.mxu0 %v1581
        %1609 = vmatpush.msra.mxu0 %v1579
        %1610 = vmatpush.msra.mxu0 %v1577
        %1611 = vmatpush.msra.mxu0 %v1575
        %1612 = vmatpush.msra.mxu0 %v1573
        %1613 = vmatpush.msra.mxu0 %v1571
        %1614 = vmatpush.msra.mxu0 %v1569
        %1615 = vmatpush.msra.mxu0 %v1567
        %1616 = vmatmul.f32.gmra.mxu0 %v1599
        %v1617 = vpop.f32.mrf.mxu0
        %v1618 = vadd.f32 0.0, %v1617
        %1619 = vdwg.mxu0
        %1620 = vmatpush.msra.mxu0 %v1598
        %1621 = vmatpush.msra.mxu0 %v1596
        %1622 = vmatpush.msra.mxu0 %v1594
        %1623 = vmatpush.msra.mxu0 %v1592
        %1624 = vmatpush.msra.mxu0 %v1590
        %1625 = vmatpush.msra.mxu0 %v1588
        %1626 = vmatpush.msra.mxu0 %v1586
        %1627 = vmatpush.msra.mxu0 %v1584
        %1628 = vmatpush.msra.mxu0 %v1582
        %1629 = vmatpush.msra.mxu0 %v1580
        %1630 = vmatpush.msra.mxu0 %v1578
        %1631 = vmatpush.msra.mxu0 %v1576
        %1632 = vmatpush.msra.mxu0 %v1574
        %1633 = vmatpush.msra.mxu0 %v1572
        %1634 = vmatpush.msra.mxu0 %v1570
        %1635 = vmatpush.msra.mxu0 %v1568
        %1636 = vmatmul.f32.gmra.mxu0 %v1599
        %v1637 = vpop.f32.mrf.mxu0
        %v1638 = vadd.f32 0.0, %v1637
        %1639 = vdwg.mxu0
        %v1640 = vld [vmem:[%s8] sm:$0xff]
        %v1641 = vld [vmem:[%s8 + $0x8] sm:$0xff]
        %v1642 = vld [vmem:[%s8 + $0x10] sm:$0xff]
        %v1643 = vld [vmem:[%s8 + $0x18] sm:$0xff]
        %v1644 = vld [vmem:[%s8 + $0x20] sm:$0xff]
        %v1645 = vld [vmem:[%s8 + $0x28] sm:$0xff]
        %v1646 = vld [vmem:[%s8 + $0x30] sm:$0xff]
        %v1647 = vld [vmem:[%s8 + $0x38] sm:$0xff]
        %v1648 = vld [vmem:[%s8 + $0x40] sm:$0xff]
        %v1649 = vld [vmem:[%s8 + $0x48] sm:$0xff]
        %v1650 = vld [vmem:[%s8 + $0x50] sm:$0xff]
        %v1651 = vld [vmem:[%s8 + $0x58] sm:$0xff]
        %v1652 = vld [vmem:[%s8 + $0x60] sm:$0xff]
        %v1653 = vld [vmem:[%s8 + $0x68] sm:$0xff]
        %v1654 = vld [vmem:[%s8 + $0x70] sm:$0xff]
        %v1655 = vld [vmem:[%s8 + $0x78] sm:$0xff]
        %v1656 = vld [vmem:[%s8 + $0x80] sm:$0xff]
        %v1657 = vld [vmem:[%s8 + $0x88] sm:$0xff]
        %v1658 = vld [vmem:[%s8 + $0x90] sm:$0xff]
        %v1659 = vld [vmem:[%s8 + $0x98] sm:$0xff]
        %v1660 = vld [vmem:[%s8 + $0xa0] sm:$0xff]
        %v1661 = vld [vmem:[%s8 + $0xa8] sm:$0xff]
        %v1662 = vld [vmem:[%s8 + $0xb0] sm:$0xff]
        %v1663 = vld [vmem:[%s8 + $0xb8] sm:$0xff]
        %v1664 = vld [vmem:[%s8 + $0xc0] sm:$0xff]
        %v1665 = vld [vmem:[%s8 + $0xc8] sm:$0xff]
        %v1666 = vld [vmem:[%s8 + $0xd0] sm:$0xff]
        %v1667 = vld [vmem:[%s8 + $0xd8] sm:$0xff]
        %v1668 = vld [vmem:[%s8 + $0xe0] sm:$0xff]
        %v1669 = vld [vmem:[%s8 + $0xe8] sm:$0xff]
        %v1670 = vld [vmem:[%s8 + $0xf0] sm:$0xff]
        %v1671 = vld [vmem:[%s8 + $0xf8] sm:$0xff]
        %v1672 = vld [vmem:[%s9] sm:$0x1]
        %v1674 = vperm.slane %v1672, 0
        %1676 = vmatpush.msra.mxu0 %v1655
        %1677 = vmatpush.msra.mxu0 %v1654
        %1678 = vmatpush.msra.mxu0 %v1653
        %1679 = vmatpush.msra.mxu0 %v1652
        %1680 = vmatpush.msra.mxu0 %v1651
        %1681 = vmatpush.msra.mxu0 %v1650
        %1682 = vmatpush.msra.mxu0 %v1649
        %1683 = vmatpush.msra.mxu0 %v1648
        %1684 = vmatpush.msra.mxu0 %v1647
        %1685 = vmatpush.msra.mxu0 %v1646
        %1686 = vmatpush.msra.mxu0 %v1645
        %1687 = vmatpush.msra.mxu0 %v1644
        %1688 = vmatpush.msra.mxu0 %v1643
        %1689 = vmatpush.msra.mxu0 %v1642
        %1690 = vmatpush.msra.mxu0 %v1641
        %1691 = vmatpush.msra.mxu0 %v1640
        %1692 = vmatmul.f32.gmra.mxu0 %v1618
        %v1693 = vpop.f32.mrf.mxu0
        %v1694 = vadd.f32 %v1674, %v1693
        %1695 = vdwg.mxu0
        %1696 = vmatpush.msra.mxu0 %v1671
        %1697 = vmatpush.msra.mxu0 %v1670
        %1698 = vmatpush.msra.mxu0 %v1669
        %1699 = vmatpush.msra.mxu0 %v1668
        %1700 = vmatpush.msra.mxu0 %v1667
        %1701 = vmatpush.msra.mxu0 %v1666
        %1702 = vmatpush.msra.mxu0 %v1665
        %1703 = vmatpush.msra.mxu0 %v1664
        %1704 = vmatpush.msra.mxu0 %v1663
        %1705 = vmatpush.msra.mxu0 %v1662
        %1706 = vmatpush.msra.mxu0 %v1661
        %1707 = vmatpush.msra.mxu0 %v1660
        %1708 = vmatpush.msra.mxu0 %v1659
        %1709 = vmatpush.msra.mxu0 %v1658
        %1710 = vmatpush.msra.mxu0 %v1657
        %1711 = vmatpush.msra.mxu0 %v1656
        %1712 = vmatmul.f32.gmra.mxu0 %v1638
        %v1713 = vpop.f32.mrf.mxu0
        %v1714 = vadd.f32 %v1694, %v1713
        %1715 = vdwg.mxu0
        %1716 = vst [vmem:[%s387] sm:$0xff] %v1714
        %s1717 = sand.u32 %s249, 1
        %s1718 = scalar_lea.sflag [#allocation4], %s1717
        %s1719 = sand.u32 %s249, 1
        %s1720 = smul.addr %s1719, 8
        %s1721 = scalar_lea.vmem [#allocation7], %s1720
        // Predicated region
        $region69: #{tpu_custom_call.1} parent=59 // pred_check
          %p1722 = pneg %p259
        $region70: #{tpu_custom_call.1} parent=59 // pred_check_branch
          %1724 = sbr.rel (%p1722) target = $region72
        $region71: #{tpu_custom_call.1} parent=59 // pred_region
          %1726 = vsyncadd %s1718, 0
          %s1727 = smul.addr %s26, 8
          %s1728 = scalar_lea.hbm %s10, %s1727
          %s1730 = sshll.u32 %s1721, 4
          %s1731 = int_to_ptr.vmem [resolvable:$true] %s1730
          %s1732 = sshll.u32 %s1728, 4
          %s1733 = int_to_ptr.hbm [resolvable:$true] %s1732
          %1735 = dma.vmem_to_hbm [thread:$0]  %s1731, 128, %s1733, %s1718
        $region72: #{tpu_custom_call.1} parent=59 // pred_fallthru
          _
      $region60: #{tpu_custom_call.1} parent=5 // pred_fallthru
        _
      %p1736 = scmp.le.s32.totalorder 2, %s21
      // Predicated region
      $region73: #{tpu_custom_call.1} parent=5 // pred_check
        %p1737 = pneg %p1736
      $region74: #{tpu_custom_call.1} parent=5 // pred_check_branch
        %1739 = sbr.rel (%p1737) target = $region76
      $region75: #{tpu_custom_call.1} parent=5 // pred_region
        %s1740 = ssub.s32 %s21, 2
        // Predicated region
        $region77: #{tpu_custom_call.1} parent=75 // pred_check
          %p1741 = pneg %p265
        $region78: #{tpu_custom_call.1} parent=75 // pred_check_branch
          %1743 = sbr.rel (%p1741) target = $region80
        $region79: #{tpu_custom_call.1} parent=75 // pred_region
          %s1744 = sand.u32 %s250, 1
          %s1745 = scalar_lea.sflag [#allocation4], %s1744
          %s1746 = sand.u32 %s250, 1
          %s1747 = smul.addr %s1746, 8
          %s1748 = scalar_lea.vmem [#allocation7], %s1747
          %1750 = dma.done %s1745, 128
        $region80: #{tpu_custom_call.1} parent=75 // pred_fallthru
          _
      $region76: #{tpu_custom_call.1} parent=5 // pred_fallthru
        _
    $region6: #{tpu_custom_call.1} parent=1 // loop_footer
      %s25 = sadd.s32 1, %s21
    $region7: #{tpu_custom_call.1} parent=1 // loop_footer_branch
      %20 = sbr.rel target = $region3
    $region8: #{tpu_custom_call.1} parent=1 // loop_exit
      _
    %1751 = vsyncpa [#allocation3], 1
    %s1752 = scalar_lea.sflag [#allocation3], 1
    %1753 = vsyncpa %s1752, 1
    %1754 = vsyncpa [#allocation6], 1
    %1755 = vsyncpa [#allocation4], 1
    %s1756 = scalar_lea.sflag [#allocation4], 1
    %1757 = vsyncpa %s1756, 1

</llo_original>
